<compile_context>
chip_gen: v7x
topology: tpu7x:2x2x1
jax: 0.10.0
libtpu: 0.0.40
codegen_flags: <defaults>
</compile_context>

<pallas_src>
import functools
from typing import NamedTuple

import numpy as np

import jax
import jax.numpy as jnp
from jax import lax
from jax.experimental import pallas as pl
from jax.experimental.pallas import tpu as pltpu


OPTIONS = dict(
    input_dim=256,
    fs=16000,
    cnn_N_filt=[8, 16, 16],
    cnn_len_filt=[17, 5, 3],
    cnn_max_pool_len=[4, 2, 2],
    cnn_act=['leaky_relu'] * 3,
    cnn_drop=[0.0] * 3,
    cnn_use_laynorm=[True, True, True],
    cnn_use_batchnorm=[False, False, False],
    cnn_use_laynorm_inp=False,
    cnn_use_batchnorm_inp=False,
)

BLOB_WIDTH = 64     # lane width of the packed parameter blob (>= max section width)
_ALIGN = 8          # every blob section starts on a sublane-aligned row


class LayerCfg(NamedTuple):
    C_in: int
    C_out: int
    K: int
    L_in: int
    L_out: int
    P: int
    L_pool: int
    L_valid: int       # L_out - P + 1 : length of the dense windowed-max vector
    take_abs: bool
    off_w: int         # blob row offsets (static)
    off_b: int
    off_g: int
    off_be: int
    off_s: int


def _align(n):
    return (n + _ALIGN - 1) // _ALIGN * _ALIGN


def build_plan(options):
    """Static per-layer shapes + row offsets into the packed parameter blob."""
    layers = []
    L = options['input_dim']
    row = 0
    for i in range(len(options['cnn_N_filt'])):
        C_in = 1 if i == 0 else options['cnn_N_filt'][i - 1]
        C_out = options['cnn_N_filt'][i]
        K = options['cnn_len_filt'][i]
        P = options['cnn_max_pool_len'][i]
        L_out = L - K + 1
        L_pool = L_out // P                     # F.max_pool1d truncates
        L_valid = L_out - P + 1
        assert max(K * C_in, L_pool) <= BLOB_WIDTH
        off_w = row;  row = _align(row + C_out)      # im2col weight (C_out, K*C_in)
        off_b = row;  row = _align(row + C_out)      # bias          (C_out, 1)
        off_g = row;  row = _align(row + C_out)      # LN gamma      (C_out, L_pool)
        off_be = row; row = _align(row + C_out)      # LN beta       (C_out, L_pool)
        off_s = row;  row = _align(row + L_valid)    # 0/1 picker    (L_valid, L_pool)
        layers.append(LayerCfg(C_in, C_out, K, L, L_out, P, L_pool, L_valid,
                               i == 0, off_w, off_b, off_g, off_be, off_s))
        L = L_pool
    return tuple(layers), row


def init_params(key, options):
    params = []
    layers, _ = build_plan(options)
    for cfg in layers:
        key, kw, kb = jax.random.split(key, 3)
        bound = 1.0 / float(np.sqrt(cfg.C_in * cfg.K))   # PyTorch Conv1d default init
        w = jax.random.uniform(kw, (cfg.C_out, cfg.C_in, cfg.K), jnp.float32, -bound, bound)
        b = jax.random.uniform(kb, (cfg.C_out,), jnp.float32, -bound, bound)
        gamma = jnp.ones((cfg.C_out, cfg.L_pool), jnp.float32)
        beta = jnp.zeros((cfg.C_out, cfg.L_pool), jnp.float32)
        params.append(dict(w=w, b=b, gamma=gamma, beta=beta))
    return params


def pack_params(params, options):
    """Pack all per-layer parameters + max-pool selection matrices into ONE
    (rows, BLOB_WIDTH) f32 blob.  Done once at init => the pallas_call has only
    2 inputs (x + blob) instead of 13 tiny DMAs."""
    layers, rows = build_plan(options)
    blob = np.zeros((rows, BLOB_WIDTH), np.float32)
    for p, cfg in zip(params, layers):
        w = np.asarray(p['w'], np.float32)                       # (C_out, C_in, K)
        # im2col layout: column index = k*C_in + c_in (lane-contiguous slab rows)
        w_im2col = np.transpose(w, (0, 2, 1)).reshape(cfg.C_out, cfg.K * cfg.C_in)
        blob[cfg.off_w:cfg.off_w + cfg.C_out, :cfg.K * cfg.C_in] = w_im2col
        blob[cfg.off_b:cfg.off_b + cfg.C_out, 0] = np.asarray(p['b'], np.float32)
        blob[cfg.off_g:cfg.off_g + cfg.C_out, :cfg.L_pool] = np.asarray(p['gamma'], np.float32)
        blob[cfg.off_be:cfg.off_be + cfg.C_out, :cfg.L_pool] = np.asarray(p['beta'], np.float32)
        # 0/1 selection matrix: picks every P-th element of the windowed max.
        # pooled[:, j] = m[:, P*j] == max over the j-th pooling window (exact in f32).
        sel = np.zeros((cfg.L_valid, cfg.L_pool), np.float32)
        sel[np.arange(cfg.L_pool) * cfg.P, np.arange(cfg.L_pool)] = 1.0
        blob[cfg.off_s:cfg.off_s + cfg.L_valid, :cfg.L_pool] = sel
    return jnp.asarray(blob)


# ---------------------------------------------------------------------------
# Pallas kernel: the whole 3-layer CNN stack, fused
# ---------------------------------------------------------------------------
def _fused_cnn_kernel(x_ref, p_ref, o_ref, slab_ref, *, B, layers, neg_slope, eps):
    # x_ref    : (B, L_in0)            raw input (layer-0 C_in == 1)
    # p_ref    : (rows, BLOB_WIDTH)    packed params (static row offsets in `layers`)
    # o_ref    : (C_out_last, B*L_pool_last)  lane-major output
    # slab_ref : VMEM scratch for the im2col slabs of layers >= 1
    xs = [x_ref[b:b + 1, :] for b in range(B)]            # each (1, L_in0)

    for li, cfg in enumerate(layers):
        C_in, C_out, K = cfg.C_in, cfg.C_out, cfg.K
        L_out, P, L_pool, L_valid = cfg.L_out, cfg.P, cfg.L_pool, cfg.L_valid

        wt = p_ref[cfg.off_w:cfg.off_w + C_out, 0:K * C_in]        # (C_out, K*C_in)
        bias = p_ref[cfg.off_b:cfg.off_b + C_out, 0:1]             # (C_out, 1)
        gamma = p_ref[cfg.off_g:cfg.off_g + C_out, 0:L_pool]       # (C_out, L_pool)
        beta = p_ref[cfg.off_be:cfg.off_be + C_out, 0:L_pool]      # (C_out, L_pool)
        sel = p_ref[cfg.off_s:cfg.off_s + L_valid, 0:L_pool]       # stride-P picker

        if li == 0:
            # ---- layer 0: direct shift-and-MAC conv on the VPU (C_in == 1) ------
            accs = []
            for b in range(B):
                xb = xs[b]                                         # (1, L_in)
                acc = wt[:, 0:1] * xb[:, 0:L_out]                  # (C_out, L_out)
                for k in range(1, K):
                    acc = acc + wt[:, k:k + 1] * xb[:, k:k + L_out]
                accs.append(jnp.abs(acc + bias))                   # torch.abs (layer 0)
        else:
            # ---- layers 1-2: im2col slab written into VMEM scratch, one MXU dot -
            for b in range(B):
                xb = xs[b]                                         # (C_in, L_in)
                for k in range(K):
                    slab_ref[k * C_in:(k + 1) * C_in,
                             b * L_out:(b + 1) * L_out] = xb[:, k:k + L_out]
            slab = slab_ref[0:K * C_in, 0:B * L_out]
            acc_all = jnp.dot(wt, slab, preferred_element_type=jnp.float32) + bias
            accs = [acc_all[:, b * L_out:(b + 1) * L_out] for b in range(B)]

        new_xs = []
        for b in range(B):                                         # B is tiny & static
            acc = accs[b]                                          # (C_out, L_out)
            # ---- maxpool1d(kernel=stride=P) without any lane-splitting reshape:
            #      windowed max in the dense layout, then stride-P compaction as a
            #      single exact 0/1 selection matmul on the (otherwise idle) MXU.
            m = acc[:, 0:L_valid]
            for p in range(1, P):
                m = jnp.maximum(m, acc[:, p:p + L_valid])
            pooled = jnp.dot(m, sel, preferred_element_type=jnp.float32)  # (C_out, L_pool)

            # ---- custom LayerNorm over last dim (unbiased std, eps on std) ------
            mean = jnp.mean(pooled, axis=-1, keepdims=True)
            diff = pooled - mean
            var = jnp.sum(diff * diff, axis=-1, keepdims=True) * (1.0 / (L_pool - 1))
            inv = pl.reciprocal(jnp.sqrt(var) + eps, approx=False)  # exact: keeps 1e-4 tol
            y = gamma * (diff * inv) + beta
            # ---- LeakyReLU(0.2); Dropout(p=0.0) is the identity ------------------
            new_xs.append(jnp.maximum(y, neg_slope * y))
        xs = new_xs

    # ---- lane-major output; the tiny (B, L*C) swap is done by XLA in the wrapper --
    Lp = layers[-1].L_pool
    for b in range(B):
        o_ref[:, b * Lp:(b + 1) * Lp] = xs[b]


# ---------------------------------------------------------------------------
# Host-side wrapper
# ---------------------------------------------------------------------------
def cnn_cnn_cnn_forward(x, param_blob, options, neg_slope=0.2, eps=1e-6):
    # x: (batch, seq_len) == (batch, input_dim); x.view(batch, 1, seq_len) is implicit.
    layers, _rows = build_plan(options)
    B = x.shape[0]
    C_last, Lp_last = layers[-1].C_out, layers[-1].L_pool
    slab_rows = max([cfg.K * cfg.C_in for cfg in layers[1:]] + [8])
    slab_cols = max([B * cfg.L_out for cfg in layers[1:]] + [128])

    kernel = functools.partial(_fused_cnn_kernel, B=B, layers=layers,
                               neg_slope=neg_slope, eps=eps)
    vmem = pl.BlockSpec(memory_space=pltpu.MemorySpace.VMEM)

    out = pl.pallas_call(
        kernel,
        out_shape=jax.ShapeDtypeStruct((C_last, B * Lp_last), jnp.float32),
        in_specs=[vmem, vmem],
        out_specs=vmem,
        scratch_shapes=[pltpu.VMEM((slab_rows, slab_cols), jnp.float32)],
    )(x, param_blob)

    # (C, B*Lp) -> (B, Lp*C): <2 KB relayout, cheaper outside than in-kernel XLU transposes.
    return jnp.transpose(out.reshape(C_last, B, Lp_last), (1, 2, 0)).reshape(B, Lp_last * C_last)


# ---------------------------------------------------------------------------
# Pure-JAX reference (correctness check only)
# ---------------------------------------------------------------------------
def _ref_forward(x, params, options, eps=1e-6):
    batch, seq_len = x.shape
    x = x.reshape(batch, 1, seq_len)
    for i, p in enumerate(params):
        y = lax.conv_general_dilated(
            x, p['w'], (1,), 'VALID',
            dimension_numbers=('NCH', 'OIH', 'NCH')) + p['b'][None, :, None]
        if i == 0:
            y = jnp.abs(y)
        P = options['cnn_max_pool_len'][i]
        Bb, C, L = y.shape
        Lp = L // P
        y = jnp.max(y[:, :, :Lp * P].reshape(Bb, C, Lp, P), axis=-1)
        mean = jnp.mean(y, axis=-1, keepdims=True)
        diff = y - mean
        std = jnp.sqrt(jnp.sum(diff * diff, axis=-1, keepdims=True) / (Lp - 1))
        y = p['gamma'] * diff / (std + eps) + p['beta']
        x = jnp.where(y >= 0, y, 0.2 * y)
    x = jnp.swapaxes(x, 1, 2)
    return x.reshape(batch, -1)


# TODO(synk): Masking / SamplingRateFFT / SamplingRateSinc branches are disabled
# in this configuration (mask='' / sampling=''); the FFT-based low-pass branch
# has no clean Pallas equivalent and is not translated.

if __name__ == "__main__":
    key = jax.random.PRNGKey(0)
    k_in, k_par = jax.random.split(key)

    batch = 2
    x = jax.random.normal(k_in, (batch, OPTIONS['input_dim']), jnp.float32)
    params = init_params(k_par, OPTIONS)
    param_blob = pack_params(params, OPTIONS)        # packed ONCE at init, not per call

    out = jax.block_until_ready(cnn_cnn_cnn_forward(x, param_blob, OPTIONS))
    ref = jax.block_until_ready(_ref_forward(x, params, OPTIONS))

    assert out.shape == (batch, 16 * 13), out.shape
    assert jnp.allclose(out, ref, atol=1e-4, rtol=1e-4), float(
        jnp.max(jnp.abs(out - ref)))
    print("KERNEL_OK")
</pallas_src>

<mosaic_0001>
module attributes {stable_mosaic.version = 11 : i64} {
  func.func @_fused_cnn_kernel(%arg0: memref<2x256xf32, #tpu.memory_space<vmem>>, %arg1: memref<488x64xf32, #tpu.memory_space<vmem>>, %arg2: memref<16x26xf32, #tpu.memory_space<vmem>>, %arg3: memref<48x128xf32, #tpu.memory_space<vmem>>) attributes {dimension_semantics = [], scalar_prefetch = 0 : i64, scratch_operands = 1 : i64, tpu.core_type = #tpu.core_type<tc>} {
    %c0 = arith.constant 0 : index
    %c0_0 = arith.constant 0 : index
    %0 = vector.load %arg0[%c0, %c0_0] : memref<2x256xf32, #tpu.memory_space<vmem>>, vector<1x256xf32>
    %c1 = arith.constant 1 : index
    %c0_1 = arith.constant 0 : index
    %1 = vector.load %arg0[%c1, %c0_1] : memref<2x256xf32, #tpu.memory_space<vmem>>, vector<1x256xf32>
    %c0_2 = arith.constant 0 : index
    %c0_3 = arith.constant 0 : index
    %2 = vector.load %arg1[%c0_2, %c0_3] : memref<488x64xf32, #tpu.memory_space<vmem>>, vector<8x17xf32>
    %c8 = arith.constant 8 : index
    %c0_4 = arith.constant 0 : index
    %3 = vector.load %arg1[%c8, %c0_4] : memref<488x64xf32, #tpu.memory_space<vmem>>, vector<8x1xf32>
    %c16 = arith.constant 16 : index
    %c0_5 = arith.constant 0 : index
    %4 = vector.load %arg1[%c16, %c0_5] : memref<488x64xf32, #tpu.memory_space<vmem>>, vector<8x60xf32>
    %c24 = arith.constant 24 : index
    %c0_6 = arith.constant 0 : index
    %5 = vector.load %arg1[%c24, %c0_6] : memref<488x64xf32, #tpu.memory_space<vmem>>, vector<8x60xf32>
    %c32 = arith.constant 32 : index
    %c0_7 = arith.constant 0 : index
    %6 = vector.load %arg1[%c32, %c0_7] : memref<488x64xf32, #tpu.memory_space<vmem>>, vector<237x60xf32>
    %7 = vector.extract_strided_slice %2 {offsets = [0, 0], sizes = [8, 1], strides = [1, 1]} : vector<8x17xf32> to vector<8x1xf32>
    %8 = vector.extract_strided_slice %0 {offsets = [0, 0], sizes = [1, 240], strides = [1, 1]} : vector<1x256xf32> to vector<1x240xf32>
    %9 = vector.broadcast %7 : vector<8x1xf32> to vector<8x240xf32>
    %10 = vector.broadcast %8 : vector<1x240xf32> to vector<8x240xf32>
    %11 = arith.mulf %9, %10 : vector<8x240xf32>
    %12 = vector.extract_strided_slice %2 {offsets = [0, 1], sizes = [8, 1], strides = [1, 1]} : vector<8x17xf32> to vector<8x1xf32>
    %13 = vector.extract_strided_slice %0 {offsets = [0, 1], sizes = [1, 240], strides = [1, 1]} : vector<1x256xf32> to vector<1x240xf32>
    %14 = vector.broadcast %12 : vector<8x1xf32> to vector<8x240xf32>
    %15 = vector.broadcast %13 : vector<1x240xf32> to vector<8x240xf32>
    %16 = arith.mulf %14, %15 : vector<8x240xf32>
    %17 = arith.addf %11, %16 : vector<8x240xf32>
    %18 = vector.extract_strided_slice %2 {offsets = [0, 2], sizes = [8, 1], strides = [1, 1]} : vector<8x17xf32> to vector<8x1xf32>
    %19 = vector.extract_strided_slice %0 {offsets = [0, 2], sizes = [1, 240], strides = [1, 1]} : vector<1x256xf32> to vector<1x240xf32>
    %20 = vector.broadcast %18 : vector<8x1xf32> to vector<8x240xf32>
    %21 = vector.broadcast %19 : vector<1x240xf32> to vector<8x240xf32>
    %22 = arith.mulf %20, %21 : vector<8x240xf32>
    %23 = arith.addf %17, %22 : vector<8x240xf32>
    %24 = vector.extract_strided_slice %2 {offsets = [0, 3], sizes = [8, 1], strides = [1, 1]} : vector<8x17xf32> to vector<8x1xf32>
    %25 = vector.extract_strided_slice %0 {offsets = [0, 3], sizes = [1, 240], strides = [1, 1]} : vector<1x256xf32> to vector<1x240xf32>
    %26 = vector.broadcast %24 : vector<8x1xf32> to vector<8x240xf32>
    %27 = vector.broadcast %25 : vector<1x240xf32> to vector<8x240xf32>
    %28 = arith.mulf %26, %27 : vector<8x240xf32>
    %29 = arith.addf %23, %28 : vector<8x240xf32>
    %30 = vector.extract_strided_slice %2 {offsets = [0, 4], sizes = [8, 1], strides = [1, 1]} : vector<8x17xf32> to vector<8x1xf32>
    %31 = vector.extract_strided_slice %0 {offsets = [0, 4], sizes = [1, 240], strides = [1, 1]} : vector<1x256xf32> to vector<1x240xf32>
    %32 = vector.broadcast %30 : vector<8x1xf32> to vector<8x240xf32>
    %33 = vector.broadcast %31 : vector<1x240xf32> to vector<8x240xf32>
    %34 = arith.mulf %32, %33 : vector<8x240xf32>
    %35 = arith.addf %29, %34 : vector<8x240xf32>
    %36 = vector.extract_strided_slice %2 {offsets = [0, 5], sizes = [8, 1], strides = [1, 1]} : vector<8x17xf32> to vector<8x1xf32>
    %37 = vector.extract_strided_slice %0 {offsets = [0, 5], sizes = [1, 240], strides = [1, 1]} : vector<1x256xf32> to vector<1x240xf32>
    %38 = vector.broadcast %36 : vector<8x1xf32> to vector<8x240xf32>
    %39 = vector.broadcast %37 : vector<1x240xf32> to vector<8x240xf32>
    %40 = arith.mulf %38, %39 : vector<8x240xf32>
    %41 = arith.addf %35, %40 : vector<8x240xf32>
    %42 = vector.extract_strided_slice %2 {offsets = [0, 6], sizes = [8, 1], strides = [1, 1]} : vector<8x17xf32> to vector<8x1xf32>
    %43 = vector.extract_strided_slice %0 {offsets = [0, 6], sizes = [1, 240], strides = [1, 1]} : vector<1x256xf32> to vector<1x240xf32>
    %44 = vector.broadcast %42 : vector<8x1xf32> to vector<8x240xf32>
    %45 = vector.broadcast %43 : vector<1x240xf32> to vector<8x240xf32>
    %46 = arith.mulf %44, %45 : vector<8x240xf32>
    %47 = arith.addf %41, %46 : vector<8x240xf32>
    %48 = vector.extract_strided_slice %2 {offsets = [0, 7], sizes = [8, 1], strides = [1, 1]} : vector<8x17xf32> to vector<8x1xf32>
    %49 = vector.extract_strided_slice %0 {offsets = [0, 7], sizes = [1, 240], strides = [1, 1]} : vector<1x256xf32> to vector<1x240xf32>
    %50 = vector.broadcast %48 : vector<8x1xf32> to vector<8x240xf32>
    %51 = vector.broadcast %49 : vector<1x240xf32> to vector<8x240xf32>
    %52 = arith.mulf %50, %51 : vector<8x240xf32>
    %53 = arith.addf %47, %52 : vector<8x240xf32>
    %54 = vector.extract_strided_slice %2 {offsets = [0, 8], sizes = [8, 1], strides = [1, 1]} : vector<8x17xf32> to vector<8x1xf32>
    %55 = vector.extract_strided_slice %0 {offsets = [0, 8], sizes = [1, 240], strides = [1, 1]} : vector<1x256xf32> to vector<1x240xf32>
    %56 = vector.broadcast %54 : vector<8x1xf32> to vector<8x240xf32>
    %57 = vector.broadcast %55 : vector<1x240xf32> to vector<8x240xf32>
    %58 = arith.mulf %56, %57 : vector<8x240xf32>
    %59 = arith.addf %53, %58 : vector<8x240xf32>
    %60 = vector.extract_strided_slice %2 {offsets = [0, 9], sizes = [8, 1], strides = [1, 1]} : vector<8x17xf32> to vector<8x1xf32>
    %61 = vector.extract_strided_slice %0 {offsets = [0, 9], sizes = [1, 240], strides = [1, 1]} : vector<1x256xf32> to vector<1x240xf32>
    %62 = vector.broadcast %60 : vector<8x1xf32> to vector<8x240xf32>
    %63 = vector.broadcast %61 : vector<1x240xf32> to vector<8x240xf32>
    %64 = arith.mulf %62, %63 : vector<8x240xf32>
    %65 = arith.addf %59, %64 : vector<8x240xf32>
    %66 = vector.extract_strided_slice %2 {offsets = [0, 10], sizes = [8, 1], strides = [1, 1]} : vector<8x17xf32> to vector<8x1xf32>
    %67 = vector.extract_strided_slice %0 {offsets = [0, 10], sizes = [1, 240], strides = [1, 1]} : vector<1x256xf32> to vector<1x240xf32>
    %68 = vector.broadcast %66 : vector<8x1xf32> to vector<8x240xf32>
    %69 = vector.broadcast %67 : vector<1x240xf32> to vector<8x240xf32>
    %70 = arith.mulf %68, %69 : vector<8x240xf32>
    %71 = arith.addf %65, %70 : vector<8x240xf32>
    %72 = vector.extract_strided_slice %2 {offsets = [0, 11], sizes = [8, 1], strides = [1, 1]} : vector<8x17xf32> to vector<8x1xf32>
    %73 = vector.extract_strided_slice %0 {offsets = [0, 11], sizes = [1, 240], strides = [1, 1]} : vector<1x256xf32> to vector<1x240xf32>
    %74 = vector.broadcast %72 : vector<8x1xf32> to vector<8x240xf32>
    %75 = vector.broadcast %73 : vector<1x240xf32> to vector<8x240xf32>
    %76 = arith.mulf %74, %75 : vector<8x240xf32>
    %77 = arith.addf %71, %76 : vector<8x240xf32>
    %78 = vector.extract_strided_slice %2 {offsets = [0, 12], sizes = [8, 1], strides = [1, 1]} : vector<8x17xf32> to vector<8x1xf32>
    %79 = vector.extract_strided_slice %0 {offsets = [0, 12], sizes = [1, 240], strides = [1, 1]} : vector<1x256xf32> to vector<1x240xf32>
    %80 = vector.broadcast %78 : vector<8x1xf32> to vector<8x240xf32>
    %81 = vector.broadcast %79 : vector<1x240xf32> to vector<8x240xf32>
    %82 = arith.mulf %80, %81 : vector<8x240xf32>
    %83 = arith.addf %77, %82 : vector<8x240xf32>
    %84 = vector.extract_strided_slice %2 {offsets = [0, 13], sizes = [8, 1], strides = [1, 1]} : vector<8x17xf32> to vector<8x1xf32>
    %85 = vector.extract_strided_slice %0 {offsets = [0, 13], sizes = [1, 240], strides = [1, 1]} : vector<1x256xf32> to vector<1x240xf32>
    %86 = vector.broadcast %84 : vector<8x1xf32> to vector<8x240xf32>
    %87 = vector.broadcast %85 : vector<1x240xf32> to vector<8x240xf32>
    %88 = arith.mulf %86, %87 : vector<8x240xf32>
    %89 = arith.addf %83, %88 : vector<8x240xf32>
    %90 = vector.extract_strided_slice %2 {offsets = [0, 14], sizes = [8, 1], strides = [1, 1]} : vector<8x17xf32> to vector<8x1xf32>
    %91 = vector.extract_strided_slice %0 {offsets = [0, 14], sizes = [1, 240], strides = [1, 1]} : vector<1x256xf32> to vector<1x240xf32>
    %92 = vector.broadcast %90 : vector<8x1xf32> to vector<8x240xf32>
    %93 = vector.broadcast %91 : vector<1x240xf32> to vector<8x240xf32>
    %94 = arith.mulf %92, %93 : vector<8x240xf32>
    %95 = arith.addf %89, %94 : vector<8x240xf32>
    %96 = vector.extract_strided_slice %2 {offsets = [0, 15], sizes = [8, 1], strides = [1, 1]} : vector<8x17xf32> to vector<8x1xf32>
    %97 = vector.extract_strided_slice %0 {offsets = [0, 15], sizes = [1, 240], strides = [1, 1]} : vector<1x256xf32> to vector<1x240xf32>
    %98 = vector.broadcast %96 : vector<8x1xf32> to vector<8x240xf32>
    %99 = vector.broadcast %97 : vector<1x240xf32> to vector<8x240xf32>
    %100 = arith.mulf %98, %99 : vector<8x240xf32>
    %101 = arith.addf %95, %100 : vector<8x240xf32>
    %102 = vector.extract_strided_slice %2 {offsets = [0, 16], sizes = [8, 1], strides = [1, 1]} : vector<8x17xf32> to vector<8x1xf32>
    %103 = vector.extract_strided_slice %0 {offsets = [0, 16], sizes = [1, 240], strides = [1, 1]} : vector<1x256xf32> to vector<1x240xf32>
    %104 = vector.broadcast %102 : vector<8x1xf32> to vector<8x240xf32>
    %105 = vector.broadcast %103 : vector<1x240xf32> to vector<8x240xf32>
    %106 = arith.mulf %104, %105 : vector<8x240xf32>
    %107 = arith.addf %101, %106 : vector<8x240xf32>
    %108 = vector.broadcast %3 : vector<8x1xf32> to vector<8x240xf32>
    %109 = arith.addf %107, %108 : vector<8x240xf32>
    %110 = math.absf %109 : vector<8x240xf32>
    %111 = vector.extract_strided_slice %2 {offsets = [0, 0], sizes = [8, 1], strides = [1, 1]} : vector<8x17xf32> to vector<8x1xf32>
    %112 = vector.extract_strided_slice %1 {offsets = [0, 0], sizes = [1, 240], strides = [1, 1]} : vector<1x256xf32> to vector<1x240xf32>
    %113 = vector.broadcast %111 : vector<8x1xf32> to vector<8x240xf32>
    %114 = vector.broadcast %112 : vector<1x240xf32> to vector<8x240xf32>
    %115 = arith.mulf %113, %114 : vector<8x240xf32>
    %116 = vector.extract_strided_slice %2 {offsets = [0, 1], sizes = [8, 1], strides = [1, 1]} : vector<8x17xf32> to vector<8x1xf32>
    %117 = vector.extract_strided_slice %1 {offsets = [0, 1], sizes = [1, 240], strides = [1, 1]} : vector<1x256xf32> to vector<1x240xf32>
    %118 = vector.broadcast %116 : vector<8x1xf32> to vector<8x240xf32>
    %119 = vector.broadcast %117 : vector<1x240xf32> to vector<8x240xf32>
    %120 = arith.mulf %118, %119 : vector<8x240xf32>
    %121 = arith.addf %115, %120 : vector<8x240xf32>
    %122 = vector.extract_strided_slice %2 {offsets = [0, 2], sizes = [8, 1], strides = [1, 1]} : vector<8x17xf32> to vector<8x1xf32>
    %123 = vector.extract_strided_slice %1 {offsets = [0, 2], sizes = [1, 240], strides = [1, 1]} : vector<1x256xf32> to vector<1x240xf32>
    %124 = vector.broadcast %122 : vector<8x1xf32> to vector<8x240xf32>
    %125 = vector.broadcast %123 : vector<1x240xf32> to vector<8x240xf32>
    %126 = arith.mulf %124, %125 : vector<8x240xf32>
    %127 = arith.addf %121, %126 : vector<8x240xf32>
    %128 = vector.extract_strided_slice %2 {offsets = [0, 3], sizes = [8, 1], strides = [1, 1]} : vector<8x17xf32> to vector<8x1xf32>
    %129 = vector.extract_strided_slice %1 {offsets = [0, 3], sizes = [1, 240], strides = [1, 1]} : vector<1x256xf32> to vector<1x240xf32>
    %130 = vector.broadcast %128 : vector<8x1xf32> to vector<8x240xf32>
    %131 = vector.broadcast %129 : vector<1x240xf32> to vector<8x240xf32>
    %132 = arith.mulf %130, %131 : vector<8x240xf32>
    %133 = arith.addf %127, %132 : vector<8x240xf32>
    %134 = vector.extract_strided_slice %2 {offsets = [0, 4], sizes = [8, 1], strides = [1, 1]} : vector<8x17xf32> to vector<8x1xf32>
    %135 = vector.extract_strided_slice %1 {offsets = [0, 4], sizes = [1, 240], strides = [1, 1]} : vector<1x256xf32> to vector<1x240xf32>
    %136 = vector.broadcast %134 : vector<8x1xf32> to vector<8x240xf32>
    %137 = vector.broadcast %135 : vector<1x240xf32> to vector<8x240xf32>
    %138 = arith.mulf %136, %137 : vector<8x240xf32>
    %139 = arith.addf %133, %138 : vector<8x240xf32>
    %140 = vector.extract_strided_slice %2 {offsets = [0, 5], sizes = [8, 1], strides = [1, 1]} : vector<8x17xf32> to vector<8x1xf32>
    %141 = vector.extract_strided_slice %1 {offsets = [0, 5], sizes = [1, 240], strides = [1, 1]} : vector<1x256xf32> to vector<1x240xf32>
    %142 = vector.broadcast %140 : vector<8x1xf32> to vector<8x240xf32>
    %143 = vector.broadcast %141 : vector<1x240xf32> to vector<8x240xf32>
    %144 = arith.mulf %142, %143 : vector<8x240xf32>
    %145 = arith.addf %139, %144 : vector<8x240xf32>
    %146 = vector.extract_strided_slice %2 {offsets = [0, 6], sizes = [8, 1], strides = [1, 1]} : vector<8x17xf32> to vector<8x1xf32>
    %147 = vector.extract_strided_slice %1 {offsets = [0, 6], sizes = [1, 240], strides = [1, 1]} : vector<1x256xf32> to vector<1x240xf32>
    %148 = vector.broadcast %146 : vector<8x1xf32> to vector<8x240xf32>
    %149 = vector.broadcast %147 : vector<1x240xf32> to vector<8x240xf32>
    %150 = arith.mulf %148, %149 : vector<8x240xf32>
    %151 = arith.addf %145, %150 : vector<8x240xf32>
    %152 = vector.extract_strided_slice %2 {offsets = [0, 7], sizes = [8, 1], strides = [1, 1]} : vector<8x17xf32> to vector<8x1xf32>
    %153 = vector.extract_strided_slice %1 {offsets = [0, 7], sizes = [1, 240], strides = [1, 1]} : vector<1x256xf32> to vector<1x240xf32>
    %154 = vector.broadcast %152 : vector<8x1xf32> to vector<8x240xf32>
    %155 = vector.broadcast %153 : vector<1x240xf32> to vector<8x240xf32>
    %156 = arith.mulf %154, %155 : vector<8x240xf32>
    %157 = arith.addf %151, %156 : vector<8x240xf32>
    %158 = vector.extract_strided_slice %2 {offsets = [0, 8], sizes = [8, 1], strides = [1, 1]} : vector<8x17xf32> to vector<8x1xf32>
    %159 = vector.extract_strided_slice %1 {offsets = [0, 8], sizes = [1, 240], strides = [1, 1]} : vector<1x256xf32> to vector<1x240xf32>
    %160 = vector.broadcast %158 : vector<8x1xf32> to vector<8x240xf32>
    %161 = vector.broadcast %159 : vector<1x240xf32> to vector<8x240xf32>
    %162 = arith.mulf %160, %161 : vector<8x240xf32>
    %163 = arith.addf %157, %162 : vector<8x240xf32>
    %164 = vector.extract_strided_slice %2 {offsets = [0, 9], sizes = [8, 1], strides = [1, 1]} : vector<8x17xf32> to vector<8x1xf32>
    %165 = vector.extract_strided_slice %1 {offsets = [0, 9], sizes = [1, 240], strides = [1, 1]} : vector<1x256xf32> to vector<1x240xf32>
    %166 = vector.broadcast %164 : vector<8x1xf32> to vector<8x240xf32>
    %167 = vector.broadcast %165 : vector<1x240xf32> to vector<8x240xf32>
    %168 = arith.mulf %166, %167 : vector<8x240xf32>
    %169 = arith.addf %163, %168 : vector<8x240xf32>
    %170 = vector.extract_strided_slice %2 {offsets = [0, 10], sizes = [8, 1], strides = [1, 1]} : vector<8x17xf32> to vector<8x1xf32>
    %171 = vector.extract_strided_slice %1 {offsets = [0, 10], sizes = [1, 240], strides = [1, 1]} : vector<1x256xf32> to vector<1x240xf32>
    %172 = vector.broadcast %170 : vector<8x1xf32> to vector<8x240xf32>
    %173 = vector.broadcast %171 : vector<1x240xf32> to vector<8x240xf32>
    %174 = arith.mulf %172, %173 : vector<8x240xf32>
    %175 = arith.addf %169, %174 : vector<8x240xf32>
    %176 = vector.extract_strided_slice %2 {offsets = [0, 11], sizes = [8, 1], strides = [1, 1]} : vector<8x17xf32> to vector<8x1xf32>
    %177 = vector.extract_strided_slice %1 {offsets = [0, 11], sizes = [1, 240], strides = [1, 1]} : vector<1x256xf32> to vector<1x240xf32>
    %178 = vector.broadcast %176 : vector<8x1xf32> to vector<8x240xf32>
    %179 = vector.broadcast %177 : vector<1x240xf32> to vector<8x240xf32>
    %180 = arith.mulf %178, %179 : vector<8x240xf32>
    %181 = arith.addf %175, %180 : vector<8x240xf32>
    %182 = vector.extract_strided_slice %2 {offsets = [0, 12], sizes = [8, 1], strides = [1, 1]} : vector<8x17xf32> to vector<8x1xf32>
    %183 = vector.extract_strided_slice %1 {offsets = [0, 12], sizes = [1, 240], strides = [1, 1]} : vector<1x256xf32> to vector<1x240xf32>
    %184 = vector.broadcast %182 : vector<8x1xf32> to vector<8x240xf32>
    %185 = vector.broadcast %183 : vector<1x240xf32> to vector<8x240xf32>
    %186 = arith.mulf %184, %185 : vector<8x240xf32>
    %187 = arith.addf %181, %186 : vector<8x240xf32>
    %188 = vector.extract_strided_slice %2 {offsets = [0, 13], sizes = [8, 1], strides = [1, 1]} : vector<8x17xf32> to vector<8x1xf32>
    %189 = vector.extract_strided_slice %1 {offsets = [0, 13], sizes = [1, 240], strides = [1, 1]} : vector<1x256xf32> to vector<1x240xf32>
    %190 = vector.broadcast %188 : vector<8x1xf32> to vector<8x240xf32>
    %191 = vector.broadcast %189 : vector<1x240xf32> to vector<8x240xf32>
    %192 = arith.mulf %190, %191 : vector<8x240xf32>
    %193 = arith.addf %187, %192 : vector<8x240xf32>
    %194 = vector.extract_strided_slice %2 {offsets = [0, 14], sizes = [8, 1], strides = [1, 1]} : vector<8x17xf32> to vector<8x1xf32>
    %195 = vector.extract_strided_slice %1 {offsets = [0, 14], sizes = [1, 240], strides = [1, 1]} : vector<1x256xf32> to vector<1x240xf32>
    %196 = vector.broadcast %194 : vector<8x1xf32> to vector<8x240xf32>
    %197 = vector.broadcast %195 : vector<1x240xf32> to vector<8x240xf32>
    %198 = arith.mulf %196, %197 : vector<8x240xf32>
    %199 = arith.addf %193, %198 : vector<8x240xf32>
    %200 = vector.extract_strided_slice %2 {offsets = [0, 15], sizes = [8, 1], strides = [1, 1]} : vector<8x17xf32> to vector<8x1xf32>
    %201 = vector.extract_strided_slice %1 {offsets = [0, 15], sizes = [1, 240], strides = [1, 1]} : vector<1x256xf32> to vector<1x240xf32>
    %202 = vector.broadcast %200 : vector<8x1xf32> to vector<8x240xf32>
    %203 = vector.broadcast %201 : vector<1x240xf32> to vector<8x240xf32>
    %204 = arith.mulf %202, %203 : vector<8x240xf32>
    %205 = arith.addf %199, %204 : vector<8x240xf32>
    %206 = vector.extract_strided_slice %2 {offsets = [0, 16], sizes = [8, 1], strides = [1, 1]} : vector<8x17xf32> to vector<8x1xf32>
    %207 = vector.extract_strided_slice %1 {offsets = [0, 16], sizes = [1, 240], strides = [1, 1]} : vector<1x256xf32> to vector<1x240xf32>
    %208 = vector.broadcast %206 : vector<8x1xf32> to vector<8x240xf32>
    %209 = vector.broadcast %207 : vector<1x240xf32> to vector<8x240xf32>
    %210 = arith.mulf %208, %209 : vector<8x240xf32>
    %211 = arith.addf %205, %210 : vector<8x240xf32>
    %212 = vector.broadcast %3 : vector<8x1xf32> to vector<8x240xf32>
    %213 = arith.addf %211, %212 : vector<8x240xf32>
    %214 = math.absf %213 : vector<8x240xf32>
    %215 = vector.extract_strided_slice %110 {offsets = [0, 0], sizes = [8, 237], strides = [1, 1]} : vector<8x240xf32> to vector<8x237xf32>
    %216 = vector.extract_strided_slice %110 {offsets = [0, 1], sizes = [8, 237], strides = [1, 1]} : vector<8x240xf32> to vector<8x237xf32>
    %217 = arith.maximumf %215, %216 : vector<8x237xf32>
    %218 = vector.extract_strided_slice %110 {offsets = [0, 2], sizes = [8, 237], strides = [1, 1]} : vector<8x240xf32> to vector<8x237xf32>
    %219 = arith.maximumf %217, %218 : vector<8x237xf32>
    %220 = vector.extract_strided_slice %110 {offsets = [0, 3], sizes = [8, 237], strides = [1, 1]} : vector<8x240xf32> to vector<8x237xf32>
    %221 = arith.maximumf %219, %220 : vector<8x237xf32>
    %cst = arith.constant dense<0.000000e+00> : vector<8x60xf32>
    %222 = tpu.matmul %221, %6, %cst {dimension_numbers = #tpu.dot_dimension_numbers<[1], [0], [0], [1], [0, 0, 1, 1], [], []>} : vector<8x237xf32>, vector<237x60xf32>, vector<8x60xf32> -> vector<8x60xf32>
    %cst_8 = arith.constant dense<0.000000e+00> : vector<8xf32>
    %223 = vector.multi_reduction <add>, %222, %cst_8 [1] : vector<8x60xf32> to vector<8xf32>
    %224 = vector.shape_cast %223 : vector<8xf32> to vector<8x1xf32>
    %cst_9 = arith.constant 6.000000e+01 : f32
    %225 = vector.broadcast %cst_9 : f32 to vector<8x1xf32>
    %226 = arith.divf %224, %225 : vector<8x1xf32>
    %227 = vector.broadcast %226 : vector<8x1xf32> to vector<8x60xf32>
    %228 = arith.subf %222, %227 : vector<8x60xf32>
    %229 = arith.mulf %228, %228 : vector<8x60xf32>
    %cst_10 = arith.constant dense<0.000000e+00> : vector<8xf32>
    %230 = vector.multi_reduction <add>, %229, %cst_10 [1] : vector<8x60xf32> to vector<8xf32>
    %231 = vector.shape_cast %230 : vector<8xf32> to vector<8x1xf32>
    %cst_11 = arith.constant 0.0169491526 : f32
    %232 = vector.broadcast %cst_11 : f32 to vector<8x1xf32>
    %233 = arith.mulf %231, %232 : vector<8x1xf32>
    %234 = math.sqrt %233 : vector<8x1xf32>
    %cst_12 = arith.constant 9.99999997E-7 : f32
    %235 = vector.broadcast %cst_12 : f32 to vector<8x1xf32>
    %236 = arith.addf %234, %235 : vector<8x1xf32>
    %237 = tpu.reciprocal %236 : vector<8x1xf32> -> vector<8x1xf32>
    %238 = vector.broadcast %237 : vector<8x1xf32> to vector<8x60xf32>
    %239 = arith.mulf %228, %238 : vector<8x60xf32>
    %240 = arith.mulf %4, %239 : vector<8x60xf32>
    %241 = arith.addf %240, %5 : vector<8x60xf32>
    %cst_13 = arith.constant 2.000000e-01 : f32
    %242 = vector.broadcast %cst_13 : f32 to vector<8x60xf32>
    %243 = arith.mulf %242, %241 : vector<8x60xf32>
    %244 = arith.maximumf %241, %243 : vector<8x60xf32>
    %245 = vector.extract_strided_slice %214 {offsets = [0, 0], sizes = [8, 237], strides = [1, 1]} : vector<8x240xf32> to vector<8x237xf32>
    %246 = vector.extract_strided_slice %214 {offsets = [0, 1], sizes = [8, 237], strides = [1, 1]} : vector<8x240xf32> to vector<8x237xf32>
    %247 = arith.maximumf %245, %246 : vector<8x237xf32>
    %248 = vector.extract_strided_slice %214 {offsets = [0, 2], sizes = [8, 237], strides = [1, 1]} : vector<8x240xf32> to vector<8x237xf32>
    %249 = arith.maximumf %247, %248 : vector<8x237xf32>
    %250 = vector.extract_strided_slice %214 {offsets = [0, 3], sizes = [8, 237], strides = [1, 1]} : vector<8x240xf32> to vector<8x237xf32>
    %251 = arith.maximumf %249, %250 : vector<8x237xf32>
    %cst_14 = arith.constant dense<0.000000e+00> : vector<8x60xf32>
    %252 = tpu.matmul %251, %6, %cst_14 {dimension_numbers = #tpu.dot_dimension_numbers<[1], [0], [0], [1], [0, 0, 1, 1], [], []>} : vector<8x237xf32>, vector<237x60xf32>, vector<8x60xf32> -> vector<8x60xf32>
    %cst_15 = arith.constant dense<0.000000e+00> : vector<8xf32>
    %253 = vector.multi_reduction <add>, %252, %cst_15 [1] : vector<8x60xf32> to vector<8xf32>
    %254 = vector.shape_cast %253 : vector<8xf32> to vector<8x1xf32>
    %cst_16 = arith.constant 6.000000e+01 : f32
    %255 = vector.broadcast %cst_16 : f32 to vector<8x1xf32>
    %256 = arith.divf %254, %255 : vector<8x1xf32>
    %257 = vector.broadcast %256 : vector<8x1xf32> to vector<8x60xf32>
    %258 = arith.subf %252, %257 : vector<8x60xf32>
    %259 = arith.mulf %258, %258 : vector<8x60xf32>
    %cst_17 = arith.constant dense<0.000000e+00> : vector<8xf32>
    %260 = vector.multi_reduction <add>, %259, %cst_17 [1] : vector<8x60xf32> to vector<8xf32>
    %261 = vector.shape_cast %260 : vector<8xf32> to vector<8x1xf32>
    %cst_18 = arith.constant 0.0169491526 : f32
    %262 = vector.broadcast %cst_18 : f32 to vector<8x1xf32>
    %263 = arith.mulf %261, %262 : vector<8x1xf32>
    %264 = math.sqrt %263 : vector<8x1xf32>
    %cst_19 = arith.constant 9.99999997E-7 : f32
    %265 = vector.broadcast %cst_19 : f32 to vector<8x1xf32>
    %266 = arith.addf %264, %265 : vector<8x1xf32>
    %267 = tpu.reciprocal %266 : vector<8x1xf32> -> vector<8x1xf32>
    %268 = vector.broadcast %267 : vector<8x1xf32> to vector<8x60xf32>
    %269 = arith.mulf %258, %268 : vector<8x60xf32>
    %270 = arith.mulf %4, %269 : vector<8x60xf32>
    %271 = arith.addf %270, %5 : vector<8x60xf32>
    %cst_20 = arith.constant 2.000000e-01 : f32
    %272 = vector.broadcast %cst_20 : f32 to vector<8x60xf32>
    %273 = arith.mulf %272, %271 : vector<8x60xf32>
    %274 = arith.maximumf %271, %273 : vector<8x60xf32>
    %c272 = arith.constant 272 : index
    %c0_21 = arith.constant 0 : index
    %275 = vector.load %arg1[%c272, %c0_21] : memref<488x64xf32, #tpu.memory_space<vmem>>, vector<16x40xf32>
    %c288 = arith.constant 288 : index
    %c0_22 = arith.constant 0 : index
    %276 = vector.load %arg1[%c288, %c0_22] : memref<488x64xf32, #tpu.memory_space<vmem>>, vector<16x1xf32>
    %c304 = arith.constant 304 : index
    %c0_23 = arith.constant 0 : index
    %277 = vector.load %arg1[%c304, %c0_23] : memref<488x64xf32, #tpu.memory_space<vmem>>, vector<16x28xf32>
    %c320 = arith.constant 320 : index
    %c0_24 = arith.constant 0 : index
    %278 = vector.load %arg1[%c320, %c0_24] : memref<488x64xf32, #tpu.memory_space<vmem>>, vector<16x28xf32>
    %c336 = arith.constant 336 : index
    %c0_25 = arith.constant 0 : index
    %279 = vector.load %arg1[%c336, %c0_25] : memref<488x64xf32, #tpu.memory_space<vmem>>, vector<55x28xf32>
    %280 = vector.extract_strided_slice %244 {offsets = [0, 0], sizes = [8, 56], strides = [1, 1]} : vector<8x60xf32> to vector<8x56xf32>
    %c0_26 = arith.constant 0 : index
    %c0_27 = arith.constant 0 : index
    %281 = vector.load %arg3[%c0_26, %c0_27] : memref<48x128xf32, #tpu.memory_space<vmem>>, vector<8x56xf32>
    tpu.vector_store %arg3[%c0_26, %c0_27], %280 {strides = array<i32>} : memref<48x128xf32, #tpu.memory_space<vmem>>, vector<8x56xf32>,
    %282 = vector.extract_strided_slice %244 {offsets = [0, 1], sizes = [8, 56], strides = [1, 1]} : vector<8x60xf32> to vector<8x56xf32>
    %c8_28 = arith.constant 8 : index
    %c0_29 = arith.constant 0 : index
    %283 = vector.load %arg3[%c8_28, %c0_29] : memref<48x128xf32, #tpu.memory_space<vmem>>, vector<8x56xf32>
    tpu.vector_store %arg3[%c8_28, %c0_29], %282 {strides = array<i32>} : memref<48x128xf32, #tpu.memory_space<vmem>>, vector<8x56xf32>,
    %284 = vector.extract_strided_slice %244 {offsets = [0, 2], sizes = [8, 56], strides = [1, 1]} : vector<8x60xf32> to vector<8x56xf32>
    %c16_30 = arith.constant 16 : index
    %c0_31 = arith.constant 0 : index
    %285 = vector.load %arg3[%c16_30, %c0_31] : memref<48x128xf32, #tpu.memory_space<vmem>>, vector<8x56xf32>
    tpu.vector_store %arg3[%c16_30, %c0_31], %284 {strides = array<i32>} : memref<48x128xf32, #tpu.memory_space<vmem>>, vector<8x56xf32>,
    %286 = vector.extract_strided_slice %244 {offsets = [0, 3], sizes = [8, 56], strides = [1, 1]} : vector<8x60xf32> to vector<8x56xf32>
    %c24_32 = arith.constant 24 : index
    %c0_33 = arith.constant 0 : index
    %287 = vector.load %arg3[%c24_32, %c0_33] : memref<48x128xf32, #tpu.memory_space<vmem>>, vector<8x56xf32>
    tpu.vector_store %arg3[%c24_32, %c0_33], %286 {strides = array<i32>} : memref<48x128xf32, #tpu.memory_space<vmem>>, vector<8x56xf32>,
    %288 = vector.extract_strided_slice %244 {offsets = [0, 4], sizes = [8, 56], strides = [1, 1]} : vector<8x60xf32> to vector<8x56xf32>
    %c32_34 = arith.constant 32 : index
    %c0_35 = arith.constant 0 : index
    %289 = vector.load %arg3[%c32_34, %c0_35] : memref<48x128xf32, #tpu.memory_space<vmem>>, vector<8x56xf32>
    tpu.vector_store %arg3[%c32_34, %c0_35], %288 {strides = array<i32>} : memref<48x128xf32, #tpu.memory_space<vmem>>, vector<8x56xf32>,
    %290 = vector.extract_strided_slice %274 {offsets = [0, 0], sizes = [8, 56], strides = [1, 1]} : vector<8x60xf32> to vector<8x56xf32>
    %c0_36 = arith.constant 0 : index
    %c56 = arith.constant 56 : index
    %291 = vector.load %arg3[%c0_36, %c56] : memref<48x128xf32, #tpu.memory_space<vmem>>, vector<8x56xf32>
    tpu.vector_store %arg3[%c0_36, %c56], %290 {strides = array<i32>} : memref<48x128xf32, #tpu.memory_space<vmem>>, vector<8x56xf32>,
    %292 = vector.extract_strided_slice %274 {offsets = [0, 1], sizes = [8, 56], strides = [1, 1]} : vector<8x60xf32> to vector<8x56xf32>
    %c8_37 = arith.constant 8 : index
    %c56_38 = arith.constant 56 : index
    %293 = vector.load %arg3[%c8_37, %c56_38] : memref<48x128xf32, #tpu.memory_space<vmem>>, vector<8x56xf32>
    tpu.vector_store %arg3[%c8_37, %c56_38], %292 {strides = array<i32>} : memref<48x128xf32, #tpu.memory_space<vmem>>, vector<8x56xf32>,
    %294 = vector.extract_strided_slice %274 {offsets = [0, 2], sizes = [8, 56], strides = [1, 1]} : vector<8x60xf32> to vector<8x56xf32>
    %c16_39 = arith.constant 16 : index
    %c56_40 = arith.constant 56 : index
    %295 = vector.load %arg3[%c16_39, %c56_40] : memref<48x128xf32, #tpu.memory_space<vmem>>, vector<8x56xf32>
    tpu.vector_store %arg3[%c16_39, %c56_40], %294 {strides = array<i32>} : memref<48x128xf32, #tpu.memory_space<vmem>>, vector<8x56xf32>,
    %296 = vector.extract_strided_slice %274 {offsets = [0, 3], sizes = [8, 56], strides = [1, 1]} : vector<8x60xf32> to vector<8x56xf32>
    %c24_41 = arith.constant 24 : index
    %c56_42 = arith.constant 56 : index
    %297 = vector.load %arg3[%c24_41, %c56_42] : memref<48x128xf32, #tpu.memory_space<vmem>>, vector<8x56xf32>
    tpu.vector_store %arg3[%c24_41, %c56_42], %296 {strides = array<i32>} : memref<48x128xf32, #tpu.memory_space<vmem>>, vector<8x56xf32>,
    %298 = vector.extract_strided_slice %274 {offsets = [0, 4], sizes = [8, 56], strides = [1, 1]} : vector<8x60xf32> to vector<8x56xf32>
    %c32_43 = arith.constant 32 : index
    %c56_44 = arith.constant 56 : index
    %299 = vector.load %arg3[%c32_43, %c56_44] : memref<48x128xf32, #tpu.memory_space<vmem>>, vector<8x56xf32>
    tpu.vector_store %arg3[%c32_43, %c56_44], %298 {strides = array<i32>} : memref<48x128xf32, #tpu.memory_space<vmem>>, vector<8x56xf32>,
    %c0_45 = arith.constant 0 : index
    %c0_46 = arith.constant 0 : index
    %300 = vector.load %arg3[%c0_45, %c0_46] : memref<48x128xf32, #tpu.memory_space<vmem>>, vector<40x112xf32>
    %cst_47 = arith.constant dense<0.000000e+00> : vector<16x112xf32>
    %301 = tpu.matmul %275, %300, %cst_47 {dimension_numbers = #tpu.dot_dimension_numbers<[1], [0], [0], [1], [0, 0, 1, 1], [], []>} : vector<16x40xf32>, vector<40x112xf32>, vector<16x112xf32> -> vector<16x112xf32>
    %302 = vector.broadcast %276 : vector<16x1xf32> to vector<16x112xf32>
    %303 = arith.addf %301, %302 : vector<16x112xf32>
    %304 = vector.extract_strided_slice %303 {offsets = [0, 0], sizes = [16, 56], strides = [1, 1]} : vector<16x112xf32> to vector<16x56xf32>
    %305 = vector.extract_strided_slice %303 {offsets = [0, 56], sizes = [16, 56], strides = [1, 1]} : vector<16x112xf32> to vector<16x56xf32>
    %306 = vector.extract_strided_slice %304 {offsets = [0, 0], sizes = [16, 55], strides = [1, 1]} : vector<16x56xf32> to vector<16x55xf32>
    %307 = vector.extract_strided_slice %304 {offsets = [0, 1], sizes = [16, 55], strides = [1, 1]} : vector<16x56xf32> to vector<16x55xf32>
    %308 = arith.maximumf %306, %307 : vector<16x55xf32>
    %cst_48 = arith.constant dense<0.000000e+00> : vector<16x28xf32>
    %309 = tpu.matmul %308, %279, %cst_48 {dimension_numbers = #tpu.dot_dimension_numbers<[1], [0], [0], [1], [0, 0, 1, 1], [], []>} : vector<16x55xf32>, vector<55x28xf32>, vector<16x28xf32> -> vector<16x28xf32>
    %cst_49 = arith.constant dense<0.000000e+00> : vector<16xf32>
    %310 = vector.multi_reduction <add>, %309, %cst_49 [1] : vector<16x28xf32> to vector<16xf32>
    %311 = vector.shape_cast %310 : vector<16xf32> to vector<16x1xf32>
    %cst_50 = arith.constant 2.800000e+01 : f32
    %312 = vector.broadcast %cst_50 : f32 to vector<16x1xf32>
    %313 = arith.divf %311, %312 : vector<16x1xf32>
    %314 = vector.broadcast %313 : vector<16x1xf32> to vector<16x28xf32>
    %315 = arith.subf %309, %314 : vector<16x28xf32>
    %316 = arith.mulf %315, %315 : vector<16x28xf32>
    %cst_51 = arith.constant dense<0.000000e+00> : vector<16xf32>
    %317 = vector.multi_reduction <add>, %316, %cst_51 [1] : vector<16x28xf32> to vector<16xf32>
    %318 = vector.shape_cast %317 : vector<16xf32> to vector<16x1xf32>
    %cst_52 = arith.constant 0.0370370373 : f32
    %319 = vector.broadcast %cst_52 : f32 to vector<16x1xf32>
    %320 = arith.mulf %318, %319 : vector<16x1xf32>
    %321 = math.sqrt %320 : vector<16x1xf32>
    %cst_53 = arith.constant 9.99999997E-7 : f32
    %322 = vector.broadcast %cst_53 : f32 to vector<16x1xf32>
    %323 = arith.addf %321, %322 : vector<16x1xf32>
    %324 = tpu.reciprocal %323 : vector<16x1xf32> -> vector<16x1xf32>
    %325 = vector.broadcast %324 : vector<16x1xf32> to vector<16x28xf32>
    %326 = arith.mulf %315, %325 : vector<16x28xf32>
    %327 = arith.mulf %277, %326 : vector<16x28xf32>
    %328 = arith.addf %327, %278 : vector<16x28xf32>
    %cst_54 = arith.constant 2.000000e-01 : f32
    %329 = vector.broadcast %cst_54 : f32 to vector<16x28xf32>
    %330 = arith.mulf %329, %328 : vector<16x28xf32>
    %331 = arith.maximumf %328, %330 : vector<16x28xf32>
    %332 = vector.extract_strided_slice %305 {offsets = [0, 0], sizes = [16, 55], strides = [1, 1]} : vector<16x56xf32> to vector<16x55xf32>
    %333 = vector.extract_strided_slice %305 {offsets = [0, 1], sizes = [16, 55], strides = [1, 1]} : vector<16x56xf32> to vector<16x55xf32>
    %334 = arith.maximumf %332, %333 : vector<16x55xf32>
    %cst_55 = arith.constant dense<0.000000e+00> : vector<16x28xf32>
    %335 = tpu.matmul %334, %279, %cst_55 {dimension_numbers = #tpu.dot_dimension_numbers<[1], [0], [0], [1], [0, 0, 1, 1], [], []>} : vector<16x55xf32>, vector<55x28xf32>, vector<16x28xf32> -> vector<16x28xf32>
    %cst_56 = arith.constant dense<0.000000e+00> : vector<16xf32>
    %336 = vector.multi_reduction <add>, %335, %cst_56 [1] : vector<16x28xf32> to vector<16xf32>
    %337 = vector.shape_cast %336 : vector<16xf32> to vector<16x1xf32>
    %cst_57 = arith.constant 2.800000e+01 : f32
    %338 = vector.broadcast %cst_57 : f32 to vector<16x1xf32>
    %339 = arith.divf %337, %338 : vector<16x1xf32>
    %340 = vector.broadcast %339 : vector<16x1xf32> to vector<16x28xf32>
    %341 = arith.subf %335, %340 : vector<16x28xf32>
    %342 = arith.mulf %341, %341 : vector<16x28xf32>
    %cst_58 = arith.constant dense<0.000000e+00> : vector<16xf32>
    %343 = vector.multi_reduction <add>, %342, %cst_58 [1] : vector<16x28xf32> to vector<16xf32>
    %344 = vector.shape_cast %343 : vector<16xf32> to vector<16x1xf32>
    %cst_59 = arith.constant 0.0370370373 : f32
    %345 = vector.broadcast %cst_59 : f32 to vector<16x1xf32>
    %346 = arith.mulf %344, %345 : vector<16x1xf32>
    %347 = math.sqrt %346 : vector<16x1xf32>
    %cst_60 = arith.constant 9.99999997E-7 : f32
    %348 = vector.broadcast %cst_60 : f32 to vector<16x1xf32>
    %349 = arith.addf %347, %348 : vector<16x1xf32>
    %350 = tpu.reciprocal %349 : vector<16x1xf32> -> vector<16x1xf32>
    %351 = vector.broadcast %350 : vector<16x1xf32> to vector<16x28xf32>
    %352 = arith.mulf %341, %351 : vector<16x28xf32>
    %353 = arith.mulf %277, %352 : vector<16x28xf32>
    %354 = arith.addf %353, %278 : vector<16x28xf32>
    %cst_61 = arith.constant 2.000000e-01 : f32
    %355 = vector.broadcast %cst_61 : f32 to vector<16x28xf32>
    %356 = arith.mulf %355, %354 : vector<16x28xf32>
    %357 = arith.maximumf %354, %356 : vector<16x28xf32>
    %c392 = arith.constant 392 : index
    %c0_62 = arith.constant 0 : index
    %358 = vector.load %arg1[%c392, %c0_62] : memref<488x64xf32, #tpu.memory_space<vmem>>, vector<16x48xf32>
    %c408 = arith.constant 408 : index
    %c0_63 = arith.constant 0 : index
    %359 = vector.load %arg1[%c408, %c0_63] : memref<488x64xf32, #tpu.memory_space<vmem>>, vector<16x1xf32>
    %c424 = arith.constant 424 : index
    %c0_64 = arith.constant 0 : index
    %360 = vector.load %arg1[%c424, %c0_64] : memref<488x64xf32, #tpu.memory_space<vmem>>, vector<16x13xf32>
    %c440 = arith.constant 440 : index
    %c0_65 = arith.constant 0 : index
    %361 = vector.load %arg1[%c440, %c0_65] : memref<488x64xf32, #tpu.memory_space<vmem>>, vector<16x13xf32>
    %c456 = arith.constant 456 : index
    %c0_66 = arith.constant 0 : index
    %362 = vector.load %arg1[%c456, %c0_66] : memref<488x64xf32, #tpu.memory_space<vmem>>, vector<25x13xf32>
    %363 = vector.extract_strided_slice %331 {offsets = [0, 0], sizes = [16, 26], strides = [1, 1]} : vector<16x28xf32> to vector<16x26xf32>
    %c0_67 = arith.constant 0 : index
    %c0_68 = arith.constant 0 : index
    %364 = vector.load %arg3[%c0_67, %c0_68] : memref<48x128xf32, #tpu.memory_space<vmem>>, vector<16x26xf32>
    tpu.vector_store %arg3[%c0_67, %c0_68], %363 {strides = array<i32>} : memref<48x128xf32, #tpu.memory_space<vmem>>, vector<16x26xf32>,
    %365 = vector.extract_strided_slice %331 {offsets = [0, 1], sizes = [16, 26], strides = [1, 1]} : vector<16x28xf32> to vector<16x26xf32>
    %c16_69 = arith.constant 16 : index
    %c0_70 = arith.constant 0 : index
    %366 = vector.load %arg3[%c16_69, %c0_70] : memref<48x128xf32, #tpu.memory_space<vmem>>, vector<16x26xf32>
    tpu.vector_store %arg3[%c16_69, %c0_70], %365 {strides = array<i32>} : memref<48x128xf32, #tpu.memory_space<vmem>>, vector<16x26xf32>,
    %367 = vector.extract_strided_slice %331 {offsets = [0, 2], sizes = [16, 26], strides = [1, 1]} : vector<16x28xf32> to vector<16x26xf32>
    %c32_71 = arith.constant 32 : index
    %c0_72 = arith.constant 0 : index
    %368 = vector.load %arg3[%c32_71, %c0_72] : memref<48x128xf32, #tpu.memory_space<vmem>>, vector<16x26xf32>
    tpu.vector_store %arg3[%c32_71, %c0_72], %367 {strides = array<i32>} : memref<48x128xf32, #tpu.memory_space<vmem>>, vector<16x26xf32>,
    %369 = vector.extract_strided_slice %357 {offsets = [0, 0], sizes = [16, 26], strides = [1, 1]} : vector<16x28xf32> to vector<16x26xf32>
    %c0_73 = arith.constant 0 : index
    %c26 = arith.constant 26 : index
    %370 = vector.load %arg3[%c0_73, %c26] : memref<48x128xf32, #tpu.memory_space<vmem>>, vector<16x26xf32>
    tpu.vector_store %arg3[%c0_73, %c26], %369 {strides = array<i32>} : memref<48x128xf32, #tpu.memory_space<vmem>>, vector<16x26xf32>,
    %371 = vector.extract_strided_slice %357 {offsets = [0, 1], sizes = [16, 26], strides = [1, 1]} : vector<16x28xf32> to vector<16x26xf32>
    %c16_74 = arith.constant 16 : index
    %c26_75 = arith.constant 26 : index
    %372 = vector.load %arg3[%c16_74, %c26_75] : memref<48x128xf32, #tpu.memory_space<vmem>>, vector<16x26xf32>
    tpu.vector_store %arg3[%c16_74, %c26_75], %371 {strides = array<i32>} : memref<48x128xf32, #tpu.memory_space<vmem>>, vector<16x26xf32>,
    %373 = vector.extract_strided_slice %357 {offsets = [0, 2], sizes = [16, 26], strides = [1, 1]} : vector<16x28xf32> to vector<16x26xf32>
    %c32_76 = arith.constant 32 : index
    %c26_77 = arith.constant 26 : index
    %374 = vector.load %arg3[%c32_76, %c26_77] : memref<48x128xf32, #tpu.memory_space<vmem>>, vector<16x26xf32>
    tpu.vector_store %arg3[%c32_76, %c26_77], %373 {strides = array<i32>} : memref<48x128xf32, #tpu.memory_space<vmem>>, vector<16x26xf32>,
    %c0_78 = arith.constant 0 : index
    %c0_79 = arith.constant 0 : index
    %375 = vector.load %arg3[%c0_78, %c0_79] : memref<48x128xf32, #tpu.memory_space<vmem>>, vector<48x52xf32>
    %cst_80 = arith.constant dense<0.000000e+00> : vector<16x52xf32>
    %376 = tpu.matmul %358, %375, %cst_80 {dimension_numbers = #tpu.dot_dimension_numbers<[1], [0], [0], [1], [0, 0, 1, 1], [], []>} : vector<16x48xf32>, vector<48x52xf32>, vector<16x52xf32> -> vector<16x52xf32>
    %377 = vector.broadcast %359 : vector<16x1xf32> to vector<16x52xf32>
    %378 = arith.addf %376, %377 : vector<16x52xf32>
    %379 = vector.extract_strided_slice %378 {offsets = [0, 0], sizes = [16, 26], strides = [1, 1]} : vector<16x52xf32> to vector<16x26xf32>
    %380 = vector.extract_strided_slice %378 {offsets = [0, 26], sizes = [16, 26], strides = [1, 1]} : vector<16x52xf32> to vector<16x26xf32>
    %381 = vector.extract_strided_slice %379 {offsets = [0, 0], sizes = [16, 25], strides = [1, 1]} : vector<16x26xf32> to vector<16x25xf32>
    %382 = vector.extract_strided_slice %379 {offsets = [0, 1], sizes = [16, 25], strides = [1, 1]} : vector<16x26xf32> to vector<16x25xf32>
    %383 = arith.maximumf %381, %382 : vector<16x25xf32>
    %cst_81 = arith.constant dense<0.000000e+00> : vector<16x13xf32>
    %384 = tpu.matmul %383, %362, %cst_81 {dimension_numbers = #tpu.dot_dimension_numbers<[1], [0], [0], [1], [0, 0, 1, 1], [], []>} : vector<16x25xf32>, vector<25x13xf32>, vector<16x13xf32> -> vector<16x13xf32>
    %cst_82 = arith.constant dense<0.000000e+00> : vector<16xf32>
    %385 = vector.multi_reduction <add>, %384, %cst_82 [1] : vector<16x13xf32> to vector<16xf32>
    %386 = vector.shape_cast %385 : vector<16xf32> to vector<16x1xf32>
    %cst_83 = arith.constant 1.300000e+01 : f32
    %387 = vector.broadcast %cst_83 : f32 to vector<16x1xf32>
    %388 = arith.divf %386, %387 : vector<16x1xf32>
    %389 = vector.broadcast %388 : vector<16x1xf32> to vector<16x13xf32>
    %390 = arith.subf %384, %389 : vector<16x13xf32>
    %391 = arith.mulf %390, %390 : vector<16x13xf32>
    %cst_84 = arith.constant dense<0.000000e+00> : vector<16xf32>
    %392 = vector.multi_reduction <add>, %391, %cst_84 [1] : vector<16x13xf32> to vector<16xf32>
    %393 = vector.shape_cast %392 : vector<16xf32> to vector<16x1xf32>
    %cst_85 = arith.constant 0.0833333358 : f32
    %394 = vector.broadcast %cst_85 : f32 to vector<16x1xf32>
    %395 = arith.mulf %393, %394 : vector<16x1xf32>
    %396 = math.sqrt %395 : vector<16x1xf32>
    %cst_86 = arith.constant 9.99999997E-7 : f32
    %397 = vector.broadcast %cst_86 : f32 to vector<16x1xf32>
    %398 = arith.addf %396, %397 : vector<16x1xf32>
    %399 = tpu.reciprocal %398 : vector<16x1xf32> -> vector<16x1xf32>
    %400 = vector.broadcast %399 : vector<16x1xf32> to vector<16x13xf32>
    %401 = arith.mulf %390, %400 : vector<16x13xf32>
    %402 = arith.mulf %360, %401 : vector<16x13xf32>
    %403 = arith.addf %402, %361 : vector<16x13xf32>
    %cst_87 = arith.constant 2.000000e-01 : f32
    %404 = vector.broadcast %cst_87 : f32 to vector<16x13xf32>
    %405 = arith.mulf %404, %403 : vector<16x13xf32>
    %406 = arith.maximumf %403, %405 : vector<16x13xf32>
    %407 = vector.extract_strided_slice %380 {offsets = [0, 0], sizes = [16, 25], strides = [1, 1]} : vector<16x26xf32> to vector<16x25xf32>
    %408 = vector.extract_strided_slice %380 {offsets = [0, 1], sizes = [16, 25], strides = [1, 1]} : vector<16x26xf32> to vector<16x25xf32>
    %409 = arith.maximumf %407, %408 : vector<16x25xf32>
    %cst_88 = arith.constant dense<0.000000e+00> : vector<16x13xf32>
    %410 = tpu.matmul %409, %362, %cst_88 {dimension_numbers = #tpu.dot_dimension_numbers<[1], [0], [0], [1], [0, 0, 1, 1], [], []>} : vector<16x25xf32>, vector<25x13xf32>, vector<16x13xf32> -> vector<16x13xf32>
    %cst_89 = arith.constant dense<0.000000e+00> : vector<16xf32>
    %411 = vector.multi_reduction <add>, %410, %cst_89 [1] : vector<16x13xf32> to vector<16xf32>
    %412 = vector.shape_cast %411 : vector<16xf32> to vector<16x1xf32>
    %cst_90 = arith.constant 1.300000e+01 : f32
    %413 = vector.broadcast %cst_90 : f32 to vector<16x1xf32>
    %414 = arith.divf %412, %413 : vector<16x1xf32>
    %415 = vector.broadcast %414 : vector<16x1xf32> to vector<16x13xf32>
    %416 = arith.subf %410, %415 : vector<16x13xf32>
    %417 = arith.mulf %416, %416 : vector<16x13xf32>
    %cst_91 = arith.constant dense<0.000000e+00> : vector<16xf32>
    %418 = vector.multi_reduction <add>, %417, %cst_91 [1] : vector<16x13xf32> to vector<16xf32>
    %419 = vector.shape_cast %418 : vector<16xf32> to vector<16x1xf32>
    %cst_92 = arith.constant 0.0833333358 : f32
    %420 = vector.broadcast %cst_92 : f32 to vector<16x1xf32>
    %421 = arith.mulf %419, %420 : vector<16x1xf32>
    %422 = math.sqrt %421 : vector<16x1xf32>
    %cst_93 = arith.constant 9.99999997E-7 : f32
    %423 = vector.broadcast %cst_93 : f32 to vector<16x1xf32>
    %424 = arith.addf %422, %423 : vector<16x1xf32>
    %425 = tpu.reciprocal %424 : vector<16x1xf32> -> vector<16x1xf32>
    %426 = vector.broadcast %425 : vector<16x1xf32> to vector<16x13xf32>
    %427 = arith.mulf %416, %426 : vector<16x13xf32>
    %428 = arith.mulf %360, %427 : vector<16x13xf32>
    %429 = arith.addf %428, %361 : vector<16x13xf32>
    %cst_94 = arith.constant 2.000000e-01 : f32
    %430 = vector.broadcast %cst_94 : f32 to vector<16x13xf32>
    %431 = arith.mulf %430, %429 : vector<16x13xf32>
    %432 = arith.maximumf %429, %431 : vector<16x13xf32>
    %c0_95 = arith.constant 0 : index
    %c0_96 = arith.constant 0 : index
    %433 = vector.load %arg2[%c0_95, %c0_96] : memref<16x26xf32, #tpu.memory_space<vmem>>, vector<16x13xf32>
    tpu.vector_store %arg2[%c0_95, %c0_96], %406 {strides = array<i32>} : memref<16x26xf32, #tpu.memory_space<vmem>>, vector<16x13xf32>,
    %c0_97 = arith.constant 0 : index
    %c13 = arith.constant 13 : index
    %434 = vector.load %arg2[%c0_97, %c13] : memref<16x26xf32, #tpu.memory_space<vmem>>, vector<16x13xf32>
    tpu.vector_store %arg2[%c0_97, %c13], %432 {strides = array<i32>} : memref<16x26xf32, #tpu.memory_space<vmem>>, vector<16x13xf32>,
    return
  }
}

</mosaic_0001>

<llo_original>
// kernel: tpu_custom_call.1
$region0: #{tpu_custom_call.1}
  #allocation0 [shape = 'u32[]', space=smem, size = 0x4, offset = 0x4, fixed_abs, tag = 'smem constant byte address 0x4 - core index']
  #allocation1 [shape = 'u32[144,128]{1,0:T(1,128)}', space=vmem, size = 0x12000, scoped, tag = 'internal scratch']
  #allocation2 [shape = 'f32[48,128]{1,0:T(8,128)}', space=vmem, size = 0x6000, scoped, tag = 'scratch operand']
  %s0 = inlined_call_operand.vmem [shape: f32[2,256], index: 0, kind: input, shape index: {}]
  %s1 = inlined_call_operand.vmem [shape: f32[488,64], index: 1, kind: input, shape index: {}]
  %s2 = inlined_call_operand.hbm [shape: f32[16,26], index: 2, kind: output, shape index: {}]
  %s3 = sld [smem:[#allocation0]]
  $region18: #{tpu_custom_call.1} parent=0
    _
  %s5 = ssub.s32 1, %s3
  %s6 = scalar_select 0, %s5, %s3
  $region1: #{tpu_custom_call.1} parent=0
    #allocation3 [shape = 'u8[8192]{0}', space=vmem, size = 0x2000, scoped, tag = 'output window, operand 0, single buffered']
    #allocation4 [shape = 's32[1]{0}', space=sflag, size = 0x4, scoped, tag = 'scoped memory for tpu_custom_call.1']
    %7 = vsyncpa [#allocation4], 0
    // Predicated region
    $region2: #{tpu_custom_call.1} parent=1 // pred_check
      _
    $region3: #{tpu_custom_call.1} parent=1 // pred_check_branch
      %9 = sbr.rel (0) target = $region5
    $region4: #{tpu_custom_call.1} parent=1 // pred_region
      _
    $region5: #{tpu_custom_call.1} parent=1 // pred_fallthru
      _
    // Predicated region
    $region6: #{tpu_custom_call.1} parent=1 // pred_check
      _
    $region7: #{tpu_custom_call.1} parent=1 // pred_check_branch
      %11 = sbr.rel (0) target = $region9
    $region8: #{tpu_custom_call.1} parent=1 // pred_region
      _
    $region9: #{tpu_custom_call.1} parent=1 // pred_fallthru
      _
    %v12 = vld [vmem:[%s0] ss:$2 sm:$0x3]
    %s13 = scalar_lea.vmem %s0, 1
    %v14 = vld [vmem:[%s13] ss:$2 sm:$0x3]
    %v15 = vld [vmem:[%s1] sm:$0xff]
    %v16 = vld [vmem:[%s1 + $0x8] sm:$0xff]
    %v17 = vld [vmem:[%s1 + $0x10] sm:$0xff]
    %v18 = vld [vmem:[%s1 + $0x18] sm:$0xff]
    %v19 = vld [vmem:[%s1 + $0x20] sm:$0xff]
    %v20 = vld [vmem:[%s1 + $0x28] sm:$0xff]
    %v21 = vld [vmem:[%s1 + $0x30] sm:$0xff]
    %v22 = vld [vmem:[%s1 + $0x38] sm:$0xff]
    %v23 = vld [vmem:[%s1 + $0x40] sm:$0xff]
    %v24 = vld [vmem:[%s1 + $0x48] sm:$0xff]
    %v25 = vld [vmem:[%s1 + $0x50] sm:$0xff]
    %v26 = vld [vmem:[%s1 + $0x58] sm:$0xff]
    %v27 = vld [vmem:[%s1 + $0x60] sm:$0xff]
    %v28 = vld [vmem:[%s1 + $0x68] sm:$0xff]
    %v29 = vld [vmem:[%s1 + $0x70] sm:$0xff]
    %v30 = vld [vmem:[%s1 + $0x78] sm:$0xff]
    %v31 = vld [vmem:[%s1 + $0x80] sm:$0xff]
    %v32 = vld [vmem:[%s1 + $0x88] sm:$0xff]
    %v33 = vld [vmem:[%s1 + $0x90] sm:$0xff]
    %v34 = vld [vmem:[%s1 + $0x98] sm:$0xff]
    %v35 = vld [vmem:[%s1 + $0xa0] sm:$0xff]
    %v36 = vld [vmem:[%s1 + $0xa8] sm:$0xff]
    %v37 = vld [vmem:[%s1 + $0xb0] sm:$0xff]
    %v38 = vld [vmem:[%s1 + $0xb8] sm:$0xff]
    %v39 = vld [vmem:[%s1 + $0xc0] sm:$0xff]
    %v40 = vld [vmem:[%s1 + $0xc8] sm:$0xff]
    %v41 = vld [vmem:[%s1 + $0xd0] sm:$0xff]
    %v42 = vld [vmem:[%s1 + $0xd8] sm:$0xff]
    %v43 = vld [vmem:[%s1 + $0xe0] sm:$0xff]
    %v44 = vld [vmem:[%s1 + $0xe8] sm:$0xff]
    %v45 = vld [vmem:[%s1 + $0xf0] sm:$0xff]
    %v46 = vld [vmem:[%s1 + $0xf8] sm:$0xff]
    %v47 = vld [vmem:[%s1 + $0x100] sm:$0xff]
    %v48 = vld [vmem:[%s1 + $0x108] sm:$0x1f]
    %50 = vset.pattern.permute.xlu0 0
    %51 = vperm.xlu0 %50, %v15
    %v52 = vpop.permute.xlu0 %51
    %v55 = vlaneseq
    %v56 = vshrl.u32 %v55, 7
    %v57 = vsub.s32 0, %v56
    %v58 = vrot.slane %v12, %v57
    %v59 = vlaneseq
    %v60 = vshrl.u32 %v59, 7
    %v61 = vsub.s32 1, %v60
    %v62 = vrot.slane %v12, %v61
    %v65 = vmul.f32 %v52, %v58
    %v66 = vmul.f32 %v52, %v62
    %67 = vset.pattern.permute.xlu0 1
    %68 = vperm.xlu0 %67, %v15
    %v69 = vpop.permute.xlu0 %68
    %v71 = vmul.f32 %v69, %v58
    %v72 = vmul.f32 %v69, %v62
    %75 = vrot.lane.b32.xlu0 %v71, 127
    %v76 = vpop.permute.xlu0 %75
    %77 = vrot.lane.b32.xlu0 %v72, 127
    %v78 = vpop.permute.xlu0 %77
    %vm79 = vcmask 1039360
    %v80 = vsel %vm79, %v76, %v78
    %v83 = vadd.f32 %v65, %v80
    %v84 = vadd.f32 %v66, %v78
    %85 = vset.pattern.permute.xlu0 2
    %86 = vperm.xlu0 %85, %v15
    %v87 = vpop.permute.xlu0 %86
    %v89 = vmul.f32 %v87, %v58
    %v90 = vmul.f32 %v87, %v62
    %93 = vrot.lane.b32.xlu0 %v89, 126
    %v94 = vpop.permute.xlu0 %93
    %95 = vrot.lane.b32.xlu0 %v90, 126
    %v96 = vpop.permute.xlu0 %95
    %vm97 = vcmask 1031168
    %v98 = vsel %vm97, %v94, %v96
    %v101 = vadd.f32 %v83, %v98
    %v102 = vadd.f32 %v84, %v96
    %103 = vset.pattern.permute.xlu0 3
    %104 = vperm.xlu0 %103, %v15
    %v105 = vpop.permute.xlu0 %104
    %v107 = vmul.f32 %v105, %v58
    %v108 = vmul.f32 %v105, %v62
    %111 = vrot.lane.b32.xlu0 %v107, 125
    %v112 = vpop.permute.xlu0 %111
    %113 = vrot.lane.b32.xlu0 %v108, 125
    %v114 = vpop.permute.xlu0 %113
    %vm115 = vcmask 1022976
    %v116 = vsel %vm115, %v112, %v114
    %v119 = vadd.f32 %v101, %v116
    %v120 = vadd.f32 %v102, %v114
    %121 = vset.pattern.permute.xlu0 4
    %122 = vperm.xlu0 %121, %v15
    %v123 = vpop.permute.xlu0 %122
    %v125 = vmul.f32 %v123, %v58
    %v126 = vmul.f32 %v123, %v62
    %129 = vrot.lane.b32.xlu0 %v125, 124
    %v130 = vpop.permute.xlu0 %129
    %131 = vrot.lane.b32.xlu0 %v126, 124
    %v132 = vpop.permute.xlu0 %131
    %vm133 = vcmask 1014784
    %v134 = vsel %vm133, %v130, %v132
    %v137 = vadd.f32 %v119, %v134
    %v138 = vadd.f32 %v120, %v132
    %139 = vset.pattern.permute.xlu0 5
    %140 = vperm.xlu0 %139, %v15
    %v141 = vpop.permute.xlu0 %140
    %v143 = vmul.f32 %v141, %v58
    %v144 = vmul.f32 %v141, %v62
    %147 = vrot.lane.b32.xlu0 %v143, 123
    %v148 = vpop.permute.xlu0 %147
    %149 = vrot.lane.b32.xlu0 %v144, 123
    %v150 = vpop.permute.xlu0 %149
    %vm151 = vcmask 1006592
    %v152 = vsel %vm151, %v148, %v150
    %v155 = vadd.f32 %v137, %v152
    %v156 = vadd.f32 %v138, %v150
    %157 = vset.pattern.permute.xlu0 6
    %158 = vperm.xlu0 %157, %v15
    %v159 = vpop.permute.xlu0 %158
    %v161 = vmul.f32 %v159, %v58
    %v162 = vmul.f32 %v159, %v62
    %165 = vrot.lane.b32.xlu0 %v161, 122
    %v166 = vpop.permute.xlu0 %165
    %167 = vrot.lane.b32.xlu0 %v162, 122
    %v168 = vpop.permute.xlu0 %167
    %vm169 = vcmask 998400
    %v170 = vsel %vm169, %v166, %v168
    %v173 = vadd.f32 %v155, %v170
    %v174 = vadd.f32 %v156, %v168
    %175 = vset.pattern.permute.xlu0 7
    %176 = vperm.xlu0 %175, %v15
    %v177 = vpop.permute.xlu0 %176
    %v179 = vmul.f32 %v177, %v58
    %v180 = vmul.f32 %v177, %v62
    %183 = vrot.lane.b32.xlu0 %v179, 121
    %v184 = vpop.permute.xlu0 %183
    %185 = vrot.lane.b32.xlu0 %v180, 121
    %v186 = vpop.permute.xlu0 %185
    %vm187 = vcmask 990208
    %v188 = vsel %vm187, %v184, %v186
    %v191 = vadd.f32 %v173, %v188
    %v192 = vadd.f32 %v174, %v186
    %193 = vset.pattern.permute.xlu0 8
    %194 = vperm.xlu0 %193, %v15
    %v195 = vpop.permute.xlu0 %194
    %v197 = vmul.f32 %v195, %v58
    %v198 = vmul.f32 %v195, %v62
    %201 = vrot.lane.b32.xlu0 %v197, 120
    %v202 = vpop.permute.xlu0 %201
    %203 = vrot.lane.b32.xlu0 %v198, 120
    %v204 = vpop.permute.xlu0 %203
    %vm205 = vcmask 982016
    %v206 = vsel %vm205, %v202, %v204
    %v209 = vadd.f32 %v191, %v206
    %v210 = vadd.f32 %v192, %v204
    %211 = vset.pattern.permute.xlu0 9
    %212 = vperm.xlu0 %211, %v15
    %v213 = vpop.permute.xlu0 %212
    %v215 = vmul.f32 %v213, %v58
    %v216 = vmul.f32 %v213, %v62
    %219 = vrot.lane.b32.xlu0 %v215, 119
    %v220 = vpop.permute.xlu0 %219
    %221 = vrot.lane.b32.xlu0 %v216, 119
    %v222 = vpop.permute.xlu0 %221
    %vm223 = vcmask 973824
    %v224 = vsel %vm223, %v220, %v222
    %v227 = vadd.f32 %v209, %v224
    %v228 = vadd.f32 %v210, %v222
    %229 = vset.pattern.permute.xlu0 10
    %230 = vperm.xlu0 %229, %v15
    %v231 = vpop.permute.xlu0 %230
    %v233 = vmul.f32 %v231, %v58
    %v234 = vmul.f32 %v231, %v62
    %237 = vrot.lane.b32.xlu0 %v233, 118
    %v238 = vpop.permute.xlu0 %237
    %239 = vrot.lane.b32.xlu0 %v234, 118
    %v240 = vpop.permute.xlu0 %239
    %vm241 = vcmask 965632
    %v242 = vsel %vm241, %v238, %v240
    %v245 = vadd.f32 %v227, %v242
    %v246 = vadd.f32 %v228, %v240
    %247 = vset.pattern.permute.xlu0 11
    %248 = vperm.xlu0 %247, %v15
    %v249 = vpop.permute.xlu0 %248
    %v251 = vmul.f32 %v249, %v58
    %v252 = vmul.f32 %v249, %v62
    %255 = vrot.lane.b32.xlu0 %v251, 117
    %v256 = vpop.permute.xlu0 %255
    %257 = vrot.lane.b32.xlu0 %v252, 117
    %v258 = vpop.permute.xlu0 %257
    %vm259 = vcmask 957440
    %v260 = vsel %vm259, %v256, %v258
    %v263 = vadd.f32 %v245, %v260
    %v264 = vadd.f32 %v246, %v258
    %265 = vset.pattern.permute.xlu0 12
    %266 = vperm.xlu0 %265, %v15
    %v267 = vpop.permute.xlu0 %266
    %v269 = vmul.f32 %v267, %v58
    %v270 = vmul.f32 %v267, %v62
    %273 = vrot.lane.b32.xlu0 %v269, 116
    %v274 = vpop.permute.xlu0 %273
    %275 = vrot.lane.b32.xlu0 %v270, 116
    %v276 = vpop.permute.xlu0 %275
    %vm277 = vcmask 949248
    %v278 = vsel %vm277, %v274, %v276
    %v281 = vadd.f32 %v263, %v278
    %v282 = vadd.f32 %v264, %v276
    %283 = vset.pattern.permute.xlu0 13
    %284 = vperm.xlu0 %283, %v15
    %v285 = vpop.permute.xlu0 %284
    %v287 = vmul.f32 %v285, %v58
    %v288 = vmul.f32 %v285, %v62
    %291 = vrot.lane.b32.xlu0 %v287, 115
    %v292 = vpop.permute.xlu0 %291
    %293 = vrot.lane.b32.xlu0 %v288, 115
    %v294 = vpop.permute.xlu0 %293
    %vm295 = vcmask 941056
    %v296 = vsel %vm295, %v292, %v294
    %v299 = vadd.f32 %v281, %v296
    %v300 = vadd.f32 %v282, %v294
    %301 = vset.pattern.permute.xlu0 14
    %302 = vperm.xlu0 %301, %v15
    %v303 = vpop.permute.xlu0 %302
    %v305 = vmul.f32 %v303, %v58
    %v306 = vmul.f32 %v303, %v62
    %309 = vrot.lane.b32.xlu0 %v305, 114
    %v310 = vpop.permute.xlu0 %309
    %311 = vrot.lane.b32.xlu0 %v306, 114
    %v312 = vpop.permute.xlu0 %311
    %vm313 = vcmask 932864
    %v314 = vsel %vm313, %v310, %v312
    %v317 = vadd.f32 %v299, %v314
    %v318 = vadd.f32 %v300, %v312
    %319 = vset.pattern.permute.xlu0 15
    %320 = vperm.xlu0 %319, %v15
    %v321 = vpop.permute.xlu0 %320
    %v323 = vmul.f32 %v321, %v58
    %v324 = vmul.f32 %v321, %v62
    %327 = vrot.lane.b32.xlu0 %v323, 113
    %v328 = vpop.permute.xlu0 %327
    %329 = vrot.lane.b32.xlu0 %v324, 113
    %v330 = vpop.permute.xlu0 %329
    %vm331 = vcmask 924672
    %v332 = vsel %vm331, %v328, %v330
    %v335 = vadd.f32 %v317, %v332
    %v336 = vadd.f32 %v318, %v330
    %337 = vset.pattern.permute.xlu0 16
    %338 = vperm.xlu0 %337, %v15
    %v339 = vpop.permute.xlu0 %338
    %v341 = vmul.f32 %v339, %v58
    %v342 = vmul.f32 %v339, %v62
    %345 = vrot.lane.b32.xlu0 %v341, 112
    %v346 = vpop.permute.xlu0 %345
    %347 = vrot.lane.b32.xlu0 %v342, 112
    %v348 = vpop.permute.xlu0 %347
    %vm349 = vcmask 916480
    %v350 = vsel %vm349, %v346, %v348
    %v353 = vadd.f32 %v335, %v350
    %v354 = vadd.f32 %v336, %v348
    %356 = vset.pattern.permute.xlu0 0
    %357 = vperm.xlu0 %356, %v16
    %v358 = vpop.permute.xlu0 %357
    %v360 = vadd.f32 %v353, %v358
    %v361 = vadd.f32 %v354, %v358
    %v362 = vand.u32 2147483647, %v360
    %v363 = vand.u32 2147483647, %v361
    %v365 = vlaneseq
    %v366 = vshrl.u32 %v365, 7
    %v367 = vsub.s32 0, %v366
    %v368 = vrot.slane %v14, %v367
    %v369 = vlaneseq
    %v370 = vshrl.u32 %v369, 7
    %v371 = vsub.s32 1, %v370
    %v372 = vrot.slane %v14, %v371
    %v375 = vmul.f32 %v52, %v368
    %v376 = vmul.f32 %v52, %v372
    %v377 = vmul.f32 %v69, %v368
    %v378 = vmul.f32 %v69, %v372
    %381 = vrot.lane.b32.xlu0 %v377, 127
    %v382 = vpop.permute.xlu0 %381
    %383 = vrot.lane.b32.xlu0 %v378, 127
    %v384 = vpop.permute.xlu0 %383
    %v385 = vsel %vm79, %v382, %v384
    %v388 = vadd.f32 %v375, %v385
    %v389 = vadd.f32 %v376, %v384
    %v390 = vmul.f32 %v87, %v368
    %v391 = vmul.f32 %v87, %v372
    %394 = vrot.lane.b32.xlu0 %v390, 126
    %v395 = vpop.permute.xlu0 %394
    %396 = vrot.lane.b32.xlu0 %v391, 126
    %v397 = vpop.permute.xlu0 %396
    %v398 = vsel %vm97, %v395, %v397
    %v401 = vadd.f32 %v388, %v398
    %v402 = vadd.f32 %v389, %v397
    %v403 = vmul.f32 %v105, %v368
    %v404 = vmul.f32 %v105, %v372
    %407 = vrot.lane.b32.xlu0 %v403, 125
    %v408 = vpop.permute.xlu0 %407
    %409 = vrot.lane.b32.xlu0 %v404, 125
    %v410 = vpop.permute.xlu0 %409
    %v411 = vsel %vm115, %v408, %v410
    %v414 = vadd.f32 %v401, %v411
    %v415 = vadd.f32 %v402, %v410
    %v416 = vmul.f32 %v123, %v368
    %v417 = vmul.f32 %v123, %v372
    %420 = vrot.lane.b32.xlu0 %v416, 124
    %v421 = vpop.permute.xlu0 %420
    %422 = vrot.lane.b32.xlu0 %v417, 124
    %v423 = vpop.permute.xlu0 %422
    %v424 = vsel %vm133, %v421, %v423
    %v427 = vadd.f32 %v414, %v424
    %v428 = vadd.f32 %v415, %v423
    %v429 = vmul.f32 %v141, %v368
    %v430 = vmul.f32 %v141, %v372
    %433 = vrot.lane.b32.xlu0 %v429, 123
    %v434 = vpop.permute.xlu0 %433
    %435 = vrot.lane.b32.xlu0 %v430, 123
    %v436 = vpop.permute.xlu0 %435
    %v437 = vsel %vm151, %v434, %v436
    %v440 = vadd.f32 %v427, %v437
    %v441 = vadd.f32 %v428, %v436
    %v442 = vmul.f32 %v159, %v368
    %v443 = vmul.f32 %v159, %v372
    %446 = vrot.lane.b32.xlu0 %v442, 122
    %v447 = vpop.permute.xlu0 %446
    %448 = vrot.lane.b32.xlu0 %v443, 122
    %v449 = vpop.permute.xlu0 %448
    %v450 = vsel %vm169, %v447, %v449
    %v453 = vadd.f32 %v440, %v450
    %v454 = vadd.f32 %v441, %v449
    %v455 = vmul.f32 %v177, %v368
    %v456 = vmul.f32 %v177, %v372
    %459 = vrot.lane.b32.xlu0 %v455, 121
    %v460 = vpop.permute.xlu0 %459
    %461 = vrot.lane.b32.xlu0 %v456, 121
    %v462 = vpop.permute.xlu0 %461
    %v463 = vsel %vm187, %v460, %v462
    %v466 = vadd.f32 %v453, %v463
    %v467 = vadd.f32 %v454, %v462
    %v468 = vmul.f32 %v195, %v368
    %v469 = vmul.f32 %v195, %v372
    %472 = vrot.lane.b32.xlu0 %v468, 120
    %v473 = vpop.permute.xlu0 %472
    %474 = vrot.lane.b32.xlu0 %v469, 120
    %v475 = vpop.permute.xlu0 %474
    %v476 = vsel %vm205, %v473, %v475
    %v479 = vadd.f32 %v466, %v476
    %v480 = vadd.f32 %v467, %v475
    %v481 = vmul.f32 %v213, %v368
    %v482 = vmul.f32 %v213, %v372
    %485 = vrot.lane.b32.xlu0 %v481, 119
    %v486 = vpop.permute.xlu0 %485
    %487 = vrot.lane.b32.xlu0 %v482, 119
    %v488 = vpop.permute.xlu0 %487
    %v489 = vsel %vm223, %v486, %v488
    %v492 = vadd.f32 %v479, %v489
    %v493 = vadd.f32 %v480, %v488
    %v494 = vmul.f32 %v231, %v368
    %v495 = vmul.f32 %v231, %v372
    %498 = vrot.lane.b32.xlu0 %v494, 118
    %v499 = vpop.permute.xlu0 %498
    %500 = vrot.lane.b32.xlu0 %v495, 118
    %v501 = vpop.permute.xlu0 %500
    %v502 = vsel %vm241, %v499, %v501
    %v505 = vadd.f32 %v492, %v502
    %v506 = vadd.f32 %v493, %v501
    %v507 = vmul.f32 %v249, %v368
    %v508 = vmul.f32 %v249, %v372
    %511 = vrot.lane.b32.xlu0 %v507, 117
    %v512 = vpop.permute.xlu0 %511
    %513 = vrot.lane.b32.xlu0 %v508, 117
    %v514 = vpop.permute.xlu0 %513
    %v515 = vsel %vm259, %v512, %v514
    %v518 = vadd.f32 %v505, %v515
    %v519 = vadd.f32 %v506, %v514
    %v520 = vmul.f32 %v267, %v368
    %v521 = vmul.f32 %v267, %v372
    %524 = vrot.lane.b32.xlu0 %v520, 116
    %v525 = vpop.permute.xlu0 %524
    %526 = vrot.lane.b32.xlu0 %v521, 116
    %v527 = vpop.permute.xlu0 %526
    %v528 = vsel %vm277, %v525, %v527
    %v531 = vadd.f32 %v518, %v528
    %v532 = vadd.f32 %v519, %v527
    %v533 = vmul.f32 %v285, %v368
    %v534 = vmul.f32 %v285, %v372
    %537 = vrot.lane.b32.xlu0 %v533, 115
    %v538 = vpop.permute.xlu0 %537
    %539 = vrot.lane.b32.xlu0 %v534, 115
    %v540 = vpop.permute.xlu0 %539
    %v541 = vsel %vm295, %v538, %v540
    %v544 = vadd.f32 %v531, %v541
    %v545 = vadd.f32 %v532, %v540
    %v546 = vmul.f32 %v303, %v368
    %v547 = vmul.f32 %v303, %v372
    %550 = vrot.lane.b32.xlu0 %v546, 114
    %v551 = vpop.permute.xlu0 %550
    %552 = vrot.lane.b32.xlu0 %v547, 114
    %v553 = vpop.permute.xlu0 %552
    %v554 = vsel %vm313, %v551, %v553
    %v557 = vadd.f32 %v544, %v554
    %v558 = vadd.f32 %v545, %v553
    %v559 = vmul.f32 %v321, %v368
    %v560 = vmul.f32 %v321, %v372
    %563 = vrot.lane.b32.xlu0 %v559, 113
    %v564 = vpop.permute.xlu0 %563
    %565 = vrot.lane.b32.xlu0 %v560, 113
    %v566 = vpop.permute.xlu0 %565
    %v567 = vsel %vm331, %v564, %v566
    %v570 = vadd.f32 %v557, %v567
    %v571 = vadd.f32 %v558, %v566
    %v572 = vmul.f32 %v339, %v368
    %v573 = vmul.f32 %v339, %v372
    %576 = vrot.lane.b32.xlu0 %v572, 112
    %v577 = vpop.permute.xlu0 %576
    %578 = vrot.lane.b32.xlu0 %v573, 112
    %v579 = vpop.permute.xlu0 %578
    %v580 = vsel %vm349, %v577, %v579
    %v583 = vadd.f32 %v570, %v580
    %v584 = vadd.f32 %v571, %v579
    %v585 = vadd.f32 %v583, %v358
    %v586 = vadd.f32 %v584, %v358
    %v587 = vand.u32 2147483647, %v585
    %v588 = vand.u32 2147483647, %v586
    %591 = vrot.lane.b32.xlu0 %v362, 127
    %v592 = vpop.permute.xlu0 %591
    %593 = vrot.lane.b32.xlu0 %v363, 127
    %v594 = vpop.permute.xlu0 %593
    %v595 = vsel %vm79, %v592, %v594
    %v598 = vmax.f32 %v362, %v595
    %v599 = vmax.f32 %v363, %v594
    %600 = vrot.lane.b32.xlu0 %v362, 126
    %v601 = vpop.permute.xlu0 %600
    %602 = vrot.lane.b32.xlu0 %v363, 126
    %v603 = vpop.permute.xlu0 %602
    %v604 = vsel %vm97, %v601, %v603
    %v607 = vmax.f32 %v598, %v604
    %v608 = vmax.f32 %v599, %v603
    %609 = vrot.lane.b32.xlu0 %v362, 125
    %v610 = vpop.permute.xlu0 %609
    %611 = vrot.lane.b32.xlu0 %v363, 125
    %v612 = vpop.permute.xlu0 %611
    %v613 = vsel %vm115, %v610, %v612
    %v616 = vmax.f32 %v607, %v613
    %v617 = vmax.f32 %v608, %v612
    %vm618 = vcmask 891904
    %v620 = vsel %vm618, %v617, 0
    %vm622 = vcmask 1044480
    %v624 = vsel %vm622, %v48, 0
    %626 = vmatprep.subr.mxu0 0.0
    %627 = vmatpush1.msra.mxu0 %v19
    %628 = vmatprep.subr.mxu0 0.0
    %629 = vmatpush1.msra.mxu0 %v20
    %630 = vmatprep.subr.mxu0 0.0
    %631 = vmatpush1.msra.mxu0 %v21
    %632 = vmatprep.subr.mxu0 0.0
    %633 = vmatpush1.msra.mxu0 %v22
    %634 = vmatprep.subr.mxu0 0.0
    %635 = vmatpush1.msra.mxu0 %v23
    %636 = vmatprep.subr.mxu0 0.0
    %637 = vmatpush1.msra.mxu0 %v24
    %638 = vmatprep.subr.mxu0 0.0
    %639 = vmatpush1.msra.mxu0 %v25
    %640 = vmatprep.subr.mxu0 0.0
    %641 = vmatpush1.msra.mxu0 %v26
    %642 = vmatprep.subr.mxu0 0.0
    %643 = vmatpush1.msra.mxu0 %v27
    %644 = vmatprep.subr.mxu0 0.0
    %645 = vmatpush1.msra.mxu0 %v28
    %646 = vmatprep.subr.mxu0 0.0
    %647 = vmatpush1.msra.mxu0 %v29
    %648 = vmatprep.subr.mxu0 0.0
    %649 = vmatpush1.msra.mxu0 %v30
    %650 = vmatprep.subr.mxu0 0.0
    %651 = vmatpush1.msra.mxu0 %v31
    %652 = vmatprep.subr.mxu0 0.0
    %653 = vmatpush1.msra.mxu0 %v32
    %654 = vmatprep.subr.mxu0 0.0
    %655 = vmatpush1.msra.mxu0 %v33
    %656 = vmatprep.subr.mxu0 0.0
    %657 = vmatpush1.msra.mxu0 %v34
    %658 = vmatprep.subr.mxu0 0.0
    %659 = vmatpush1.msra.mxu0 %v35
    %660 = vmatprep.subr.mxu0 0.0
    %661 = vmatpush1.msra.mxu0 %v36
    %662 = vmatprep.subr.mxu0 0.0
    %663 = vmatpush1.msra.mxu0 %v37
    %664 = vmatprep.subr.mxu0 0.0
    %665 = vmatpush1.msra.mxu0 %v38
    %666 = vmatprep.subr.mxu0 0.0
    %667 = vmatpush1.msra.mxu0 %v39
    %668 = vmatprep.subr.mxu0 0.0
    %669 = vmatpush1.msra.mxu0 %v40
    %670 = vmatprep.subr.mxu0 0.0
    %671 = vmatpush1.msra.mxu0 %v41
    %672 = vmatprep.subr.mxu0 0.0
    %673 = vmatpush1.msra.mxu0 %v42
    %674 = vmatprep.subr.mxu0 0.0
    %675 = vmatpush1.msra.mxu0 %v43
    %676 = vmatprep.subr.mxu0 0.0
    %677 = vmatpush1.msra.mxu0 %v44
    %678 = vmatprep.subr.mxu0 0.0
    %679 = vmatpush1.msra.mxu0 %v45
    %680 = vmatprep.subr.mxu0 0.0
    %681 = vmatpush1.msra.mxu0 %v46
    %682 = vmatprep.subr.mxu0 0.0
    %683 = vmatpush1.msra.mxu0 %v47
    %684 = vmatprep.subr.mxu0 0.0
    %685 = vmatpush1.msra.mxu0 %v624
    %686 = vmatprep.subr.mxu0 0.0
    %687 = vmatpush1.msra.mxu0 0.0
    %688 = vmatprep.subr.mxu0 0.0
    %689 = vmatpush1.msra.mxu0 0.0
    %690 = vmatprep.mubr.f32.mxu0 %v620
    %691 = vmatmul.mubr.f32.gmra.mrb[0].mxu0 %v616
    %v692 = vpop.f32.mrb[0].mxu0
    %v693 = vadd.f32 0.0, %v692
    %v694 = vpop.f32.mrb[0].mxu0
    %695 = vdwg.mxu0
    %vm696 = vcmask 490496
    %v697 = vsel %vm696, %v693, 0.0
    %698 = vadd.xlane.f32.xlu0 %v697
    %v699 = vpop.xlane.xlu0 %698
    %v700 = vrcp.pop 60.0
    %v701 = vmul.f32 %v699, %v700
    %v702 = vsub.f32 %v693, %v701
    %v703 = vmul.f32 %v702, %v702
    %v704 = vsel %vm696, %v703, 0.0
    %705 = vadd.xlane.f32.xlu0 %v704
    %v706 = vpop.xlane.xlu0 %705
    %v707 = vmul.f32 %v706, 0.016949153
    %v708 = vrsqrt.pop %v707
    %v709 = vmul.f32 %v707, %v708
    %vm710 = vcmp.eq.f32.partialorder %v707, inf
    %v711 = vsel %vm710, %v707, %v709
    %vm712 = vcmp.eq.f32.partialorder %v707, 0.0
    %v713 = vand.u32 %v707, 2147483648
    %v714 = vsel %vm712, %v713, %v711
    %v715 = vadd.f32 %v714, 1e-06
    %v716 = vrcp.pop %v715
    %v717 = vmul.f32 %v702, %v716
    %v718 = vmul.f32 %v17, %v717
    %v719 = vadd.f32 %v718, %v18
    %v720 = vmul.f32 %v719, 0.2
    %v721 = vmax.f32 %v719, %v720
    %724 = vrot.lane.b32.xlu0 %v587, 127
    %v725 = vpop.permute.xlu0 %724
    %726 = vrot.lane.b32.xlu0 %v588, 127
    %v727 = vpop.permute.xlu0 %726
    %v728 = vsel %vm79, %v725, %v727
    %v731 = vmax.f32 %v587, %v728
    %v732 = vmax.f32 %v588, %v727
    %733 = vrot.lane.b32.xlu0 %v587, 126
    %v734 = vpop.permute.xlu0 %733
    %735 = vrot.lane.b32.xlu0 %v588, 126
    %v736 = vpop.permute.xlu0 %735
    %v737 = vsel %vm97, %v734, %v736
    %v740 = vmax.f32 %v731, %v737
    %v741 = vmax.f32 %v732, %v736
    %742 = vrot.lane.b32.xlu0 %v587, 125
    %v743 = vpop.permute.xlu0 %742
    %744 = vrot.lane.b32.xlu0 %v588, 125
    %v745 = vpop.permute.xlu0 %744
    %v746 = vsel %vm115, %v743, %v745
    %v749 = vmax.f32 %v740, %v746
    %v750 = vmax.f32 %v741, %v745
    %v752 = vsel %vm618, %v750, 0
    %754 = vmatprep.subr.mxu0 0.0
    %755 = vmatpush1.msra.mxu0 %v19
    %756 = vmatprep.subr.mxu0 0.0
    %757 = vmatpush1.msra.mxu0 %v20
    %758 = vmatprep.subr.mxu0 0.0
    %759 = vmatpush1.msra.mxu0 %v21
    %760 = vmatprep.subr.mxu0 0.0
    %761 = vmatpush1.msra.mxu0 %v22
    %762 = vmatprep.subr.mxu0 0.0
    %763 = vmatpush1.msra.mxu0 %v23
    %764 = vmatprep.subr.mxu0 0.0
    %765 = vmatpush1.msra.mxu0 %v24
    %766 = vmatprep.subr.mxu0 0.0
    %767 = vmatpush1.msra.mxu0 %v25
    %768 = vmatprep.subr.mxu0 0.0
    %769 = vmatpush1.msra.mxu0 %v26
    %770 = vmatprep.subr.mxu0 0.0
    %771 = vmatpush1.msra.mxu0 %v27
    %772 = vmatprep.subr.mxu0 0.0
    %773 = vmatpush1.msra.mxu0 %v28
    %774 = vmatprep.subr.mxu0 0.0
    %775 = vmatpush1.msra.mxu0 %v29
    %776 = vmatprep.subr.mxu0 0.0
    %777 = vmatpush1.msra.mxu0 %v30
    %778 = vmatprep.subr.mxu0 0.0
    %779 = vmatpush1.msra.mxu0 %v31
    %780 = vmatprep.subr.mxu0 0.0
    %781 = vmatpush1.msra.mxu0 %v32
    %782 = vmatprep.subr.mxu0 0.0
    %783 = vmatpush1.msra.mxu0 %v33
    %784 = vmatprep.subr.mxu0 0.0
    %785 = vmatpush1.msra.mxu0 %v34
    %786 = vmatprep.subr.mxu0 0.0
    %787 = vmatpush1.msra.mxu0 %v35
    %788 = vmatprep.subr.mxu0 0.0
    %789 = vmatpush1.msra.mxu0 %v36
    %790 = vmatprep.subr.mxu0 0.0
    %791 = vmatpush1.msra.mxu0 %v37
    %792 = vmatprep.subr.mxu0 0.0
    %793 = vmatpush1.msra.mxu0 %v38
    %794 = vmatprep.subr.mxu0 0.0
    %795 = vmatpush1.msra.mxu0 %v39
    %796 = vmatprep.subr.mxu0 0.0
    %797 = vmatpush1.msra.mxu0 %v40
    %798 = vmatprep.subr.mxu0 0.0
    %799 = vmatpush1.msra.mxu0 %v41
    %800 = vmatprep.subr.mxu0 0.0
    %801 = vmatpush1.msra.mxu0 %v42
    %802 = vmatprep.subr.mxu0 0.0
    %803 = vmatpush1.msra.mxu0 %v43
    %804 = vmatprep.subr.mxu0 0.0
    %805 = vmatpush1.msra.mxu0 %v44
    %806 = vmatprep.subr.mxu0 0.0
    %807 = vmatpush1.msra.mxu0 %v45
    %808 = vmatprep.subr.mxu0 0.0
    %809 = vmatpush1.msra.mxu0 %v46
    %810 = vmatprep.subr.mxu0 0.0
    %811 = vmatpush1.msra.mxu0 %v47
    %812 = vmatprep.subr.mxu0 0.0
    %813 = vmatpush1.msra.mxu0 %v624
    %814 = vmatprep.subr.mxu0 0.0
    %815 = vmatpush1.msra.mxu0 0.0
    %816 = vmatprep.subr.mxu0 0.0
    %817 = vmatpush1.msra.mxu0 0.0
    %818 = vmatprep.mubr.f32.mxu0 %v752
    %819 = vmatmul.mubr.f32.gmra.mrb[0].mxu0 %v749
    %v820 = vpop.f32.mrb[0].mxu0
    %v821 = vadd.f32 0.0, %v820
    %v822 = vpop.f32.mrb[0].mxu0
    %823 = vdwg.mxu0
    %v824 = vsel %vm696, %v821, 0.0
    %825 = vadd.xlane.f32.xlu0 %v824
    %v826 = vpop.xlane.xlu0 %825
    %v827 = vmul.f32 %v826, %v700
    %v828 = vsub.f32 %v821, %v827
    %v829 = vmul.f32 %v828, %v828
    %v830 = vsel %vm696, %v829, 0.0
    %831 = vadd.xlane.f32.xlu0 %v830
    %v832 = vpop.xlane.xlu0 %831
    %v833 = vmul.f32 %v832, 0.016949153
    %v834 = vrsqrt.pop %v833
    %v835 = vmul.f32 %v833, %v834
    %vm836 = vcmp.eq.f32.partialorder %v833, inf
    %v837 = vsel %vm836, %v833, %v835
    %vm838 = vcmp.eq.f32.partialorder %v833, 0.0
    %v839 = vand.u32 %v833, 2147483648
    %v840 = vsel %vm838, %v839, %v837
    %v841 = vadd.f32 %v840, 1e-06
    %v842 = vrcp.pop %v841
    %v843 = vmul.f32 %v828, %v842
    %v844 = vmul.f32 %v17, %v843
    %v845 = vadd.f32 %v844, %v18
    %v846 = vmul.f32 %v845, 0.2
    %v847 = vmax.f32 %v845, %v846
    %v848 = vld [vmem:[%s1 + $0x110] sm:$0xff]
    %v849 = vld [vmem:[%s1 + $0x118] sm:$0xff]
    %v850 = vld [vmem:[%s1 + $0x120] sm:$0xff]
    %v851 = vld [vmem:[%s1 + $0x128] sm:$0xff]
    %v852 = vld [vmem:[%s1 + $0x130] sm:$0xff]
    %v853 = vld [vmem:[%s1 + $0x138] sm:$0xff]
    %v854 = vld [vmem:[%s1 + $0x140] sm:$0xff]
    %v855 = vld [vmem:[%s1 + $0x148] sm:$0xff]
    %v856 = vld [vmem:[%s1 + $0x150] sm:$0xff]
    %v857 = vld [vmem:[%s1 + $0x158] sm:$0xff]
    %v858 = vld [vmem:[%s1 + $0x160] sm:$0xff]
    %v859 = vld [vmem:[%s1 + $0x168] sm:$0xff]
    %v860 = vld [vmem:[%s1 + $0x170] sm:$0xff]
    %v861 = vld [vmem:[%s1 + $0x178] sm:$0xff]
    %v862 = vld [vmem:[%s1 + $0x180] sm:$0x7f]
    %vm863 = vcmask 457728
    %864 = vst.msk [vmem:[#allocation2] sm:$0xff] %vm863, %v721
    %866 = vrot.lane.b32.xlu0 %v721, 127
    %v867 = vpop.permute.xlu0 %866
    %869 = vst.msk [vmem:[#allocation2 + $0x8] sm:$0xff] %vm863, %v867
    %870 = vrot.lane.b32.xlu0 %v721, 126
    %v871 = vpop.permute.xlu0 %870
    %873 = vst.msk [vmem:[#allocation2 + $0x10] sm:$0xff] %vm863, %v871
    %874 = vrot.lane.b32.xlu0 %v721, 125
    %v875 = vpop.permute.xlu0 %874
    %877 = vst.msk [vmem:[#allocation2 + $0x18] sm:$0xff] %vm863, %v875
    %878 = vrot.lane.b32.xlu0 %v721, 124
    %v879 = vpop.permute.xlu0 %878
    %881 = vst.msk [vmem:[#allocation2 + $0x20] sm:$0xff] %vm863, %v879
    %883 = vrot.lane.b32.xlu0 %v847, 56
    %v884 = vpop.permute.xlu0 %883
    %vm886 = vcmask 916928
    %887 = vst.msk [vmem:[#allocation2] sm:$0xff] %vm886, %v884
    %888 = vrot.lane.b32.xlu0 %v847, 55
    %v889 = vpop.permute.xlu0 %888
    %891 = vst.msk [vmem:[#allocation2 + $0x8] sm:$0xff] %vm886, %v889
    %892 = vrot.lane.b32.xlu0 %v847, 54
    %v893 = vpop.permute.xlu0 %892
    %895 = vst.msk [vmem:[#allocation2 + $0x10] sm:$0xff] %vm886, %v893
    %896 = vrot.lane.b32.xlu0 %v847, 53
    %v897 = vpop.permute.xlu0 %896
    %899 = vst.msk [vmem:[#allocation2 + $0x18] sm:$0xff] %vm886, %v897
    %900 = vrot.lane.b32.xlu0 %v847, 52
    %v901 = vpop.permute.xlu0 %900
    %903 = vst.msk [vmem:[#allocation2 + $0x20] sm:$0xff] %vm886, %v901
    %v904 = vld [vmem:[#allocation2] sm:$0xff]
    %v905 = vld [vmem:[#allocation2 + $0x8] sm:$0xff]
    %v906 = vld [vmem:[#allocation2 + $0x10] sm:$0xff]
    %v907 = vld [vmem:[#allocation2 + $0x18] sm:$0xff]
    %v908 = vld [vmem:[#allocation2 + $0x20] sm:$0xff]
    %910 = vset.pattern.permute.xlu0 0
    %911 = vperm.xlu0 %910, %v850
    %v912 = vpop.permute.xlu0 %911
    %915 = vset.pattern.permute.xlu0 0
    %916 = vperm.xlu0 %915, %v851
    %v917 = vpop.permute.xlu0 %916
    %vm919 = vcmask 326656
    %v921 = vsel %vm919, %v848, 0
    %v924 = vsel %vm919, %v849, 0
    %926 = vmatprep.subr.mxu0 0.0
    %927 = vmatpush1.msra.mxu0 %v904
    %928 = vmatprep.subr.mxu0 0.0
    %929 = vmatpush1.msra.mxu0 %v905
    %930 = vmatprep.subr.mxu0 0.0
    %931 = vmatpush1.msra.mxu0 %v906
    %932 = vmatprep.subr.mxu0 0.0
    %933 = vmatpush1.msra.mxu0 %v907
    %934 = vmatprep.subr.mxu0 0.0
    %935 = vmatpush1.msra.mxu0 %v908
    %936 = vmatprep.subr.mxu0 0.0
    %937 = vmatpush1.msra.mxu0 0.0
    %938 = vmatprep.subr.mxu0 0.0
    %939 = vmatpush1.msra.mxu0 0.0
    %940 = vmatprep.subr.mxu0 0.0
    %941 = vmatpush1.msra.mxu0 0.0
    %942 = vmatprep.subr.mxu0 0.0
    %943 = vmatpush1.msra.mxu0 0.0
    %944 = vmatprep.subr.mxu0 0.0
    %945 = vmatpush1.msra.mxu0 0.0
    %946 = vmatprep.subr.mxu0 0.0
    %947 = vmatpush1.msra.mxu0 0.0
    %948 = vmatprep.subr.mxu0 0.0
    %949 = vmatpush1.msra.mxu0 0.0
    %950 = vmatprep.subr.mxu0 0.0
    %951 = vmatpush1.msra.mxu0 0.0
    %952 = vmatprep.subr.mxu0 0.0
    %953 = vmatpush1.msra.mxu0 0.0
    %954 = vmatprep.subr.mxu0 0.0
    %955 = vmatpush1.msra.mxu0 0.0
    %956 = vmatprep.subr.mxu0 0.0
    %957 = vmatpush1.msra.mxu0 0.0
    %958 = vmatprep.subr.mxu0 0.0
    %959 = vmatpush1.msra.mxu0 0.0
    %960 = vmatprep.subr.mxu0 0.0
    %961 = vmatpush1.msra.mxu0 0.0
    %962 = vmatprep.subr.mxu0 0.0
    %963 = vmatpush1.msra.mxu0 0.0
    %964 = vmatprep.subr.mxu0 0.0
    %965 = vmatpush1.msra.mxu0 0.0
    %966 = vmatprep.subr.mxu0 0.0
    %967 = vmatpush1.msra.mxu0 0.0
    %968 = vmatprep.subr.mxu0 0.0
    %969 = vmatpush1.msra.mxu0 0.0
    %970 = vmatprep.subr.mxu0 0.0
    %971 = vmatpush1.msra.mxu0 0.0
    %972 = vmatprep.subr.mxu0 0.0
    %973 = vmatpush1.msra.mxu0 0.0
    %974 = vmatprep.subr.mxu0 0.0
    %975 = vmatpush1.msra.mxu0 0.0
    %976 = vmatprep.subr.mxu0 0.0
    %977 = vmatpush1.msra.mxu0 0.0
    %978 = vmatprep.subr.mxu0 0.0
    %979 = vmatpush1.msra.mxu0 0.0
    %980 = vmatprep.subr.mxu0 0.0
    %981 = vmatpush1.msra.mxu0 0.0
    %982 = vmatprep.subr.mxu0 0.0
    %983 = vmatpush1.msra.mxu0 0.0
    %984 = vmatprep.subr.mxu0 0.0
    %985 = vmatpush1.msra.mxu0 0.0
    %986 = vmatprep.subr.mxu0 0.0
    %987 = vmatpush1.msra.mxu0 0.0
    %988 = vmatprep.subr.mxu0 0.0
    %989 = vmatpush1.msra.mxu0 0.0
    %990 = vmatprep.mubr.f32.mxu0 0.0
    %991 = vmatmul.mubr.f32.gmra.mrb[0].mxu0 %v921
    %v992 = vpop.f32.mrb[0].mxu0
    %v993 = vadd.f32 %v912, %v992
    %v994 = vpop.f32.mrb[0].mxu0
    %995 = vmatprep.mubr.f32.mxu0 0.0
    %996 = vmatmul.mubr.f32.gmra.mrb[0].mxu0 %v924
    %v997 = vpop.f32.mrb[0].mxu0
    %v998 = vadd.f32 %v917, %v997
    %v999 = vpop.f32.mrb[0].mxu0
    %1000 = vdwg.mxu0
    %1003 = vrot.lane.b32.xlu0 %v993, 127
    %v1004 = vpop.permute.xlu0 %1003
    %1005 = vrot.lane.b32.xlu0 %v998, 127
    %v1006 = vpop.permute.xlu0 %1005
    %v1009 = vmax.f32 %v993, %v1004
    %v1010 = vmax.f32 %v998, %v1006
    %vm1011 = vcmask 449536
    %v1013 = vsel %vm1011, %v1009, 0
    %v1016 = vsel %vm1011, %v1010, 0
    %vm1018 = vcmask 1046528
    %v1020 = vsel %vm1018, %v862, 0
    %1022 = vmatprep.subr.mxu0 0.0
    %1023 = vmatpush1.msra.mxu0 %v856
    %1024 = vmatprep.subr.mxu0 0.0
    %1025 = vmatpush1.msra.mxu0 %v857
    %1026 = vmatprep.subr.mxu0 0.0
    %1027 = vmatpush1.msra.mxu0 %v858
    %1028 = vmatprep.subr.mxu0 0.0
    %1029 = vmatpush1.msra.mxu0 %v859
    %1030 = vmatprep.subr.mxu0 0.0
    %1031 = vmatpush1.msra.mxu0 %v860
    %1032 = vmatprep.subr.mxu0 0.0
    %1033 = vmatpush1.msra.mxu0 %v861
    %1034 = vmatprep.subr.mxu0 0.0
    %1035 = vmatpush1.msra.mxu0 %v1020
    %1036 = vmatprep.subr.mxu0 0.0
    %1037 = vmatpush1.msra.mxu0 0.0
    %1038 = vmatprep.subr.mxu0 0.0
    %1039 = vmatpush1.msra.mxu0 0.0
    %1040 = vmatprep.subr.mxu0 0.0
    %1041 = vmatpush1.msra.mxu0 0.0
    %1042 = vmatprep.subr.mxu0 0.0
    %1043 = vmatpush1.msra.mxu0 0.0
    %1044 = vmatprep.subr.mxu0 0.0
    %1045 = vmatpush1.msra.mxu0 0.0
    %1046 = vmatprep.subr.mxu0 0.0
    %1047 = vmatpush1.msra.mxu0 0.0
    %1048 = vmatprep.subr.mxu0 0.0
    %1049 = vmatpush1.msra.mxu0 0.0
    %1050 = vmatprep.subr.mxu0 0.0
    %1051 = vmatpush1.msra.mxu0 0.0
    %1052 = vmatprep.subr.mxu0 0.0
    %1053 = vmatpush1.msra.mxu0 0.0
    %1054 = vmatprep.subr.mxu0 0.0
    %1055 = vmatpush1.msra.mxu0 0.0
    %1056 = vmatprep.subr.mxu0 0.0
    %1057 = vmatpush1.msra.mxu0 0.0
    %1058 = vmatprep.subr.mxu0 0.0
    %1059 = vmatpush1.msra.mxu0 0.0
    %1060 = vmatprep.subr.mxu0 0.0
    %1061 = vmatpush1.msra.mxu0 0.0
    %1062 = vmatprep.subr.mxu0 0.0
    %1063 = vmatpush1.msra.mxu0 0.0
    %1064 = vmatprep.subr.mxu0 0.0
    %1065 = vmatpush1.msra.mxu0 0.0
    %1066 = vmatprep.subr.mxu0 0.0
    %1067 = vmatpush1.msra.mxu0 0.0
    %1068 = vmatprep.subr.mxu0 0.0
    %1069 = vmatpush1.msra.mxu0 0.0
    %1070 = vmatprep.subr.mxu0 0.0
    %1071 = vmatpush1.msra.mxu0 0.0
    %1072 = vmatprep.subr.mxu0 0.0
    %1073 = vmatpush1.msra.mxu0 0.0
    %1074 = vmatprep.subr.mxu0 0.0
    %1075 = vmatpush1.msra.mxu0 0.0
    %1076 = vmatprep.subr.mxu0 0.0
    %1077 = vmatpush1.msra.mxu0 0.0
    %1078 = vmatprep.subr.mxu0 0.0
    %1079 = vmatpush1.msra.mxu0 0.0
    %1080 = vmatprep.subr.mxu0 0.0
    %1081 = vmatpush1.msra.mxu0 0.0
    %1082 = vmatprep.subr.mxu0 0.0
    %1083 = vmatpush1.msra.mxu0 0.0
    %1084 = vmatprep.subr.mxu0 0.0
    %1085 = vmatpush1.msra.mxu0 0.0
    %1086 = vmatprep.mubr.f32.mxu0 0.0
    %1087 = vmatmul.mubr.f32.gmra.mrb[0].mxu0 %v1013
    %v1088 = vpop.f32.mrb[0].mxu0
    %v1089 = vadd.f32 0.0, %v1088
    %v1090 = vpop.f32.mrb[0].mxu0
    %1091 = vmatprep.mubr.f32.mxu0 0.0
    %1092 = vmatmul.mubr.f32.gmra.mrb[0].mxu0 %v1016
    %v1093 = vpop.f32.mrb[0].mxu0
    %v1094 = vadd.f32 0.0, %v1093
    %v1095 = vpop.f32.mrb[0].mxu0
    %1096 = vdwg.mxu0
    %vm1097 = vcmask 228352
    %v1098 = vsel %vm1097, %v1089, 0.0
    %1099 = vadd.xlane.f32.xlu0 %v1098
    %v1100 = vpop.xlane.xlu0 %1099
    %v1101 = vsel %vm1097, %v1094, 0.0
    %1102 = vadd.xlane.f32.xlu0 %v1101
    %v1103 = vpop.xlane.xlu0 %1102
    %v1104 = vrcp.pop 28.0
    %v1105 = vmul.f32 %v1100, %v1104
    %v1106 = vmul.f32 %v1103, %v1104
    %v1107 = vsub.f32 %v1089, %v1105
    %v1108 = vsub.f32 %v1094, %v1106
    %v1109 = vmul.f32 %v1107, %v1107
    %v1110 = vmul.f32 %v1108, %v1108
    %v1111 = vsel %vm1097, %v1109, 0.0
    %1112 = vadd.xlane.f32.xlu0 %v1111
    %v1113 = vpop.xlane.xlu0 %1112
    %v1114 = vsel %vm1097, %v1110, 0.0
    %1115 = vadd.xlane.f32.xlu0 %v1114
    %v1116 = vpop.xlane.xlu0 %1115
    %v1117 = vmul.f32 %v1113, 0.037037037
    %v1118 = vmul.f32 %v1116, 0.037037037
    %v1119 = vrsqrt.pop %v1117
    %v1120 = vmul.f32 %v1117, %v1119
    %vm1121 = vcmp.eq.f32.partialorder %v1117, inf
    %v1122 = vsel %vm1121, %v1117, %v1120
    %vm1123 = vcmp.eq.f32.partialorder %v1117, 0.0
    %v1124 = vand.u32 %v1117, 2147483648
    %v1125 = vsel %vm1123, %v1124, %v1122
    %v1126 = vrsqrt.pop %v1118
    %v1127 = vmul.f32 %v1118, %v1126
    %vm1128 = vcmp.eq.f32.partialorder %v1118, inf
    %v1129 = vsel %vm1128, %v1118, %v1127
    %vm1130 = vcmp.eq.f32.partialorder %v1118, 0.0
    %v1131 = vand.u32 %v1118, 2147483648
    %v1132 = vsel %vm1130, %v1131, %v1129
    %v1133 = vadd.f32 %v1125, 1e-06
    %v1134 = vadd.f32 %v1132, 1e-06
    %v1135 = vrcp.pop %v1133
    %v1136 = vrcp.pop %v1134
    %v1137 = vmul.f32 %v1107, %v1135
    %v1138 = vmul.f32 %v1108, %v1136
    %v1139 = vmul.f32 %v852, %v1137
    %v1140 = vmul.f32 %v853, %v1138
    %v1141 = vadd.f32 %v1139, %v854
    %v1142 = vadd.f32 %v1140, %v855
    %v1143 = vmul.f32 %v1141, 0.2
    %v1144 = vmul.f32 %v1142, 0.2
    %v1145 = vmax.f32 %v1141, %v1143
    %v1146 = vmax.f32 %v1142, %v1144
    %1147 = vrot.lane.b32.xlu0 %v1009, 72
    %v1148 = vpop.permute.xlu0 %1147
    %1149 = vrot.lane.b32.xlu0 %v1010, 72
    %v1150 = vpop.permute.xlu0 %1149
    %v1151 = vsel %vm1011, %v1148, 0
    %v1153 = vsel %vm1011, %v1150, 0
    %1155 = vmatprep.subr.mxu0 0.0
    %1156 = vmatpush1.msra.mxu0 %v856
    %1157 = vmatprep.subr.mxu0 0.0
    %1158 = vmatpush1.msra.mxu0 %v857
    %1159 = vmatprep.subr.mxu0 0.0
    %1160 = vmatpush1.msra.mxu0 %v858
    %1161 = vmatprep.subr.mxu0 0.0
    %1162 = vmatpush1.msra.mxu0 %v859
    %1163 = vmatprep.subr.mxu0 0.0
    %1164 = vmatpush1.msra.mxu0 %v860
    %1165 = vmatprep.subr.mxu0 0.0
    %1166 = vmatpush1.msra.mxu0 %v861
    %1167 = vmatprep.subr.mxu0 0.0
    %1168 = vmatpush1.msra.mxu0 %v1020
    %1169 = vmatprep.subr.mxu0 0.0
    %1170 = vmatpush1.msra.mxu0 0.0
    %1171 = vmatprep.subr.mxu0 0.0
    %1172 = vmatpush1.msra.mxu0 0.0
    %1173 = vmatprep.subr.mxu0 0.0
    %1174 = vmatpush1.msra.mxu0 0.0
    %1175 = vmatprep.subr.mxu0 0.0
    %1176 = vmatpush1.msra.mxu0 0.0
    %1177 = vmatprep.subr.mxu0 0.0
    %1178 = vmatpush1.msra.mxu0 0.0
    %1179 = vmatprep.subr.mxu0 0.0
    %1180 = vmatpush1.msra.mxu0 0.0
    %1181 = vmatprep.subr.mxu0 0.0
    %1182 = vmatpush1.msra.mxu0 0.0
    %1183 = vmatprep.subr.mxu0 0.0
    %1184 = vmatpush1.msra.mxu0 0.0
    %1185 = vmatprep.subr.mxu0 0.0
    %1186 = vmatpush1.msra.mxu0 0.0
    %1187 = vmatprep.subr.mxu0 0.0
    %1188 = vmatpush1.msra.mxu0 0.0
    %1189 = vmatprep.subr.mxu0 0.0
    %1190 = vmatpush1.msra.mxu0 0.0
    %1191 = vmatprep.subr.mxu0 0.0
    %1192 = vmatpush1.msra.mxu0 0.0
    %1193 = vmatprep.subr.mxu0 0.0
    %1194 = vmatpush1.msra.mxu0 0.0
    %1195 = vmatprep.subr.mxu0 0.0
    %1196 = vmatpush1.msra.mxu0 0.0
    %1197 = vmatprep.subr.mxu0 0.0
    %1198 = vmatpush1.msra.mxu0 0.0
    %1199 = vmatprep.subr.mxu0 0.0
    %1200 = vmatpush1.msra.mxu0 0.0
    %1201 = vmatprep.subr.mxu0 0.0
    %1202 = vmatpush1.msra.mxu0 0.0
    %1203 = vmatprep.subr.mxu0 0.0
    %1204 = vmatpush1.msra.mxu0 0.0
    %1205 = vmatprep.subr.mxu0 0.0
    %1206 = vmatpush1.msra.mxu0 0.0
    %1207 = vmatprep.subr.mxu0 0.0
    %1208 = vmatpush1.msra.mxu0 0.0
    %1209 = vmatprep.subr.mxu0 0.0
    %1210 = vmatpush1.msra.mxu0 0.0
    %1211 = vmatprep.subr.mxu0 0.0
    %1212 = vmatpush1.msra.mxu0 0.0
    %1213 = vmatprep.subr.mxu0 0.0
    %1214 = vmatpush1.msra.mxu0 0.0
    %1215 = vmatprep.subr.mxu0 0.0
    %1216 = vmatpush1.msra.mxu0 0.0
    %1217 = vmatprep.subr.mxu0 0.0
    %1218 = vmatpush1.msra.mxu0 0.0
    %1219 = vmatprep.mubr.f32.mxu0 0.0
    %1220 = vmatmul.mubr.f32.gmra.mrb[0].mxu0 %v1151
    %v1221 = vpop.f32.mrb[0].mxu0
    %v1222 = vadd.f32 0.0, %v1221
    %v1223 = vpop.f32.mrb[0].mxu0
    %1224 = vmatprep.mubr.f32.mxu0 0.0
    %1225 = vmatmul.mubr.f32.gmra.mrb[0].mxu0 %v1153
    %v1226 = vpop.f32.mrb[0].mxu0
    %v1227 = vadd.f32 0.0, %v1226
    %v1228 = vpop.f32.mrb[0].mxu0
    %1229 = vdwg.mxu0
    %v1230 = vsel %vm1097, %v1222, 0.0
    %1231 = vadd.xlane.f32.xlu0 %v1230
    %v1232 = vpop.xlane.xlu0 %1231
    %v1233 = vsel %vm1097, %v1227, 0.0
    %1234 = vadd.xlane.f32.xlu0 %v1233
    %v1235 = vpop.xlane.xlu0 %1234
    %v1236 = vmul.f32 %v1232, %v1104
    %v1237 = vmul.f32 %v1235, %v1104
    %v1238 = vsub.f32 %v1222, %v1236
    %v1239 = vsub.f32 %v1227, %v1237
    %v1240 = vmul.f32 %v1238, %v1238
    %v1241 = vmul.f32 %v1239, %v1239
    %v1242 = vsel %vm1097, %v1240, 0.0
    %1243 = vadd.xlane.f32.xlu0 %v1242
    %v1244 = vpop.xlane.xlu0 %1243
    %v1245 = vsel %vm1097, %v1241, 0.0
    %1246 = vadd.xlane.f32.xlu0 %v1245
    %v1247 = vpop.xlane.xlu0 %1246
    %v1248 = vmul.f32 %v1244, 0.037037037
    %v1249 = vmul.f32 %v1247, 0.037037037
    %v1250 = vrsqrt.pop %v1248
    %v1251 = vmul.f32 %v1248, %v1250
    %vm1252 = vcmp.eq.f32.partialorder %v1248, inf
    %v1253 = vsel %vm1252, %v1248, %v1251
    %vm1254 = vcmp.eq.f32.partialorder %v1248, 0.0
    %v1255 = vand.u32 %v1248, 2147483648
    %v1256 = vsel %vm1254, %v1255, %v1253
    %v1257 = vrsqrt.pop %v1249
    %v1258 = vmul.f32 %v1249, %v1257
    %vm1259 = vcmp.eq.f32.partialorder %v1249, inf
    %v1260 = vsel %vm1259, %v1249, %v1258
    %vm1261 = vcmp.eq.f32.partialorder %v1249, 0.0
    %v1262 = vand.u32 %v1249, 2147483648
    %v1263 = vsel %vm1261, %v1262, %v1260
    %v1264 = vadd.f32 %v1256, 1e-06
    %v1265 = vadd.f32 %v1263, 1e-06
    %v1266 = vrcp.pop %v1264
    %v1267 = vrcp.pop %v1265
    %v1268 = vmul.f32 %v1238, %v1266
    %v1269 = vmul.f32 %v1239, %v1267
    %v1270 = vmul.f32 %v852, %v1268
    %v1271 = vmul.f32 %v853, %v1269
    %v1272 = vadd.f32 %v1270, %v854
    %v1273 = vadd.f32 %v1271, %v855
    %v1274 = vmul.f32 %v1272, 0.2
    %v1275 = vmul.f32 %v1273, 0.2
    %v1276 = vmax.f32 %v1272, %v1274
    %v1277 = vmax.f32 %v1273, %v1275
    %v1278 = vld [vmem:[%s1 + $0x188] sm:$0xff]
    %v1279 = vld [vmem:[%s1 + $0x190] sm:$0xff]
    %v1280 = vld [vmem:[%s1 + $0x198] sm:$0xff]
    %v1281 = vld [vmem:[%s1 + $0x1a0] sm:$0xff]
    %v1282 = vld [vmem:[%s1 + $0x1a8] sm:$0xff]
    %v1283 = vld [vmem:[%s1 + $0x1b0] sm:$0xff]
    %v1284 = vld [vmem:[%s1 + $0x1b8] sm:$0xff]
    %v1285 = vld [vmem:[%s1 + $0x1c0] sm:$0xff]
    %v1286 = vld [vmem:[%s1 + $0x1c8] sm:$0xff]
    %v1287 = vld [vmem:[%s1 + $0x1d0] sm:$0xff]
    %v1288 = vld [vmem:[%s1 + $0x1d8] sm:$0xff]
    %v1289 = vld [vmem:[%s1 + $0x1e0] sm:$0x1]
    %vm1290 = vcmask 211968
    %1291 = vst.msk [vmem:[#allocation2] sm:$0xff] %vm1290, %v1145
    %1292 = vst.msk [vmem:[#allocation2 + $0x8] sm:$0xff] %vm1290, %v1146
    %1295 = vrot.lane.b32.xlu0 %v1145, 127
    %v1296 = vpop.permute.xlu0 %1295
    %1297 = vrot.lane.b32.xlu0 %v1146, 127
    %v1298 = vpop.permute.xlu0 %1297
    %1301 = vst.msk [vmem:[#allocation2 + $0x10] sm:$0xff] %vm1290, %v1296
    %1302 = vst.msk [vmem:[#allocation2 + $0x18] sm:$0xff] %vm1290, %v1298
    %1303 = vrot.lane.b32.xlu0 %v1145, 126
    %v1304 = vpop.permute.xlu0 %1303
    %1305 = vrot.lane.b32.xlu0 %v1146, 126
    %v1306 = vpop.permute.xlu0 %1305
    %1309 = vst.msk [vmem:[#allocation2 + $0x20] sm:$0xff] %vm1290, %v1304
    %1310 = vst.msk [vmem:[#allocation2 + $0x28] sm:$0xff] %vm1290, %v1306
    %1313 = vrot.lane.b32.xlu0 %v1276, 26
    %v1314 = vpop.permute.xlu0 %1313
    %1315 = vrot.lane.b32.xlu0 %v1277, 26
    %v1316 = vpop.permute.xlu0 %1315
    %vm1319 = vcmask 425168
    %1320 = vst.msk [vmem:[#allocation2] sm:$0xff] %vm1319, %v1314
    %1321 = vst.msk [vmem:[#allocation2 + $0x8] sm:$0xff] %vm1319, %v1316
    %1322 = vrot.lane.b32.xlu0 %v1276, 25
    %v1323 = vpop.permute.xlu0 %1322
    %1324 = vrot.lane.b32.xlu0 %v1277, 25
    %v1325 = vpop.permute.xlu0 %1324
    %1328 = vst.msk [vmem:[#allocation2 + $0x10] sm:$0xff] %vm1319, %v1323
    %1329 = vst.msk [vmem:[#allocation2 + $0x18] sm:$0xff] %vm1319, %v1325
    %1330 = vrot.lane.b32.xlu0 %v1276, 24
    %v1331 = vpop.permute.xlu0 %1330
    %1332 = vrot.lane.b32.xlu0 %v1277, 24
    %v1333 = vpop.permute.xlu0 %1332
    %1336 = vst.msk [vmem:[#allocation2 + $0x20] sm:$0xff] %vm1319, %v1331
    %1337 = vst.msk [vmem:[#allocation2 + $0x28] sm:$0xff] %vm1319, %v1333
    %v1338 = vld [vmem:[#allocation2] sm:$0xff]
    %v1339 = vld [vmem:[#allocation2 + $0x8] sm:$0xff]
    %v1340 = vld [vmem:[#allocation2 + $0x10] sm:$0xff]
    %v1341 = vld [vmem:[#allocation2 + $0x18] sm:$0xff]
    %v1342 = vld [vmem:[#allocation2 + $0x20] sm:$0xff]
    %v1343 = vld [vmem:[#allocation2 + $0x28] sm:$0xff]
    %1345 = vset.pattern.permute.xlu0 0
    %1346 = vperm.xlu0 %1345, %v1280
    %v1347 = vpop.permute.xlu0 %1346
    %1350 = vset.pattern.permute.xlu0 0
    %1351 = vperm.xlu0 %1350, %v1281
    %v1352 = vpop.permute.xlu0 %1351
    %vm1354 = vcmask 392192
    %v1356 = vsel %vm1354, %v1278, 0
    %v1359 = vsel %vm1354, %v1279, 0
    %1361 = vmatprep.subr.mxu0 0.0
    %1362 = vmatpush1.msra.mxu0 %v1338
    %1363 = vmatprep.subr.mxu0 0.0
    %1364 = vmatpush1.msra.mxu0 %v1339
    %1365 = vmatprep.subr.mxu0 0.0
    %1366 = vmatpush1.msra.mxu0 %v1340
    %1367 = vmatprep.subr.mxu0 0.0
    %1368 = vmatpush1.msra.mxu0 %v1341
    %1369 = vmatprep.subr.mxu0 0.0
    %1370 = vmatpush1.msra.mxu0 %v1342
    %1371 = vmatprep.subr.mxu0 0.0
    %1372 = vmatpush1.msra.mxu0 %v1343
    %1373 = vmatprep.subr.mxu0 0.0
    %1374 = vmatpush1.msra.mxu0 0.0
    %1375 = vmatprep.subr.mxu0 0.0
    %1376 = vmatpush1.msra.mxu0 0.0
    %1377 = vmatprep.subr.mxu0 0.0
    %1378 = vmatpush1.msra.mxu0 0.0
    %1379 = vmatprep.subr.mxu0 0.0
    %1380 = vmatpush1.msra.mxu0 0.0
    %1381 = vmatprep.subr.mxu0 0.0
    %1382 = vmatpush1.msra.mxu0 0.0
    %1383 = vmatprep.subr.mxu0 0.0
    %1384 = vmatpush1.msra.mxu0 0.0
    %1385 = vmatprep.subr.mxu0 0.0
    %1386 = vmatpush1.msra.mxu0 0.0
    %1387 = vmatprep.subr.mxu0 0.0
    %1388 = vmatpush1.msra.mxu0 0.0
    %1389 = vmatprep.subr.mxu0 0.0
    %1390 = vmatpush1.msra.mxu0 0.0
    %1391 = vmatprep.subr.mxu0 0.0
    %1392 = vmatpush1.msra.mxu0 0.0
    %1393 = vmatprep.subr.mxu0 0.0
    %1394 = vmatpush1.msra.mxu0 0.0
    %1395 = vmatprep.subr.mxu0 0.0
    %1396 = vmatpush1.msra.mxu0 0.0
    %1397 = vmatprep.subr.mxu0 0.0
    %1398 = vmatpush1.msra.mxu0 0.0
    %1399 = vmatprep.subr.mxu0 0.0
    %1400 = vmatpush1.msra.mxu0 0.0
    %1401 = vmatprep.subr.mxu0 0.0
    %1402 = vmatpush1.msra.mxu0 0.0
    %1403 = vmatprep.subr.mxu0 0.0
    %1404 = vmatpush1.msra.mxu0 0.0
    %1405 = vmatprep.subr.mxu0 0.0
    %1406 = vmatpush1.msra.mxu0 0.0
    %1407 = vmatprep.subr.mxu0 0.0
    %1408 = vmatpush1.msra.mxu0 0.0
    %1409 = vmatprep.subr.mxu0 0.0
    %1410 = vmatpush1.msra.mxu0 0.0
    %1411 = vmatprep.subr.mxu0 0.0
    %1412 = vmatpush1.msra.mxu0 0.0
    %1413 = vmatprep.subr.mxu0 0.0
    %1414 = vmatpush1.msra.mxu0 0.0
    %1415 = vmatprep.subr.mxu0 0.0
    %1416 = vmatpush1.msra.mxu0 0.0
    %1417 = vmatprep.subr.mxu0 0.0
    %1418 = vmatpush1.msra.mxu0 0.0
    %1419 = vmatprep.subr.mxu0 0.0
    %1420 = vmatpush1.msra.mxu0 0.0
    %1421 = vmatprep.subr.mxu0 0.0
    %1422 = vmatpush1.msra.mxu0 0.0
    %1423 = vmatprep.subr.mxu0 0.0
    %1424 = vmatpush1.msra.mxu0 0.0
    %1425 = vmatprep.mubr.f32.mxu0 0.0
    %1426 = vmatmul.mubr.f32.gmra.mrb[0].mxu0 %v1356
    %v1427 = vpop.f32.mrb[0].mxu0
    %v1428 = vadd.f32 %v1347, %v1427
    %v1429 = vpop.f32.mrb[0].mxu0
    %1430 = vmatprep.mubr.f32.mxu0 0.0
    %1431 = vmatmul.mubr.f32.gmra.mrb[0].mxu0 %v1359
    %v1432 = vpop.f32.mrb[0].mxu0
    %v1433 = vadd.f32 %v1352, %v1432
    %v1434 = vpop.f32.mrb[0].mxu0
    %1435 = vdwg.mxu0
    %1438 = vrot.lane.b32.xlu0 %v1428, 127
    %v1439 = vpop.permute.xlu0 %1438
    %1440 = vrot.lane.b32.xlu0 %v1433, 127
    %v1441 = vpop.permute.xlu0 %1440
    %v1444 = vmax.f32 %v1428, %v1439
    %v1445 = vmax.f32 %v1433, %v1441
    %vm1446 = vcmask 203776
    %v1448 = vsel %vm1446, %v1444, 0
    %v1451 = vsel %vm1446, %v1445, 0
    %vm1453 = vcmask 1040384
    %v1455 = vsel %vm1453, %v1289, 0
    %1457 = vmatprep.subr.mxu0 0.0
    %1458 = vmatpush1.msra.mxu0 %v1286
    %1459 = vmatprep.subr.mxu0 0.0
    %1460 = vmatpush1.msra.mxu0 %v1287
    %1461 = vmatprep.subr.mxu0 0.0
    %1462 = vmatpush1.msra.mxu0 %v1288
    %1463 = vmatprep.subr.mxu0 0.0
    %1464 = vmatpush1.msra.mxu0 %v1455
    %1465 = vmatprep.subr.mxu0 0.0
    %1466 = vmatpush1.msra.mxu0 0.0
    %1467 = vmatprep.subr.mxu0 0.0
    %1468 = vmatpush1.msra.mxu0 0.0
    %1469 = vmatprep.subr.mxu0 0.0
    %1470 = vmatpush1.msra.mxu0 0.0
    %1471 = vmatprep.subr.mxu0 0.0
    %1472 = vmatpush1.msra.mxu0 0.0
    %1473 = vmatprep.subr.mxu0 0.0
    %1474 = vmatpush1.msra.mxu0 0.0
    %1475 = vmatprep.subr.mxu0 0.0
    %1476 = vmatpush1.msra.mxu0 0.0
    %1477 = vmatprep.subr.mxu0 0.0
    %1478 = vmatpush1.msra.mxu0 0.0
    %1479 = vmatprep.subr.mxu0 0.0
    %1480 = vmatpush1.msra.mxu0 0.0
    %1481 = vmatprep.subr.mxu0 0.0
    %1482 = vmatpush1.msra.mxu0 0.0
    %1483 = vmatprep.subr.mxu0 0.0
    %1484 = vmatpush1.msra.mxu0 0.0
    %1485 = vmatprep.subr.mxu0 0.0
    %1486 = vmatpush1.msra.mxu0 0.0
    %1487 = vmatprep.subr.mxu0 0.0
    %1488 = vmatpush1.msra.mxu0 0.0
    %1489 = vmatprep.subr.mxu0 0.0
    %1490 = vmatpush1.msra.mxu0 0.0
    %1491 = vmatprep.subr.mxu0 0.0
    %1492 = vmatpush1.msra.mxu0 0.0
    %1493 = vmatprep.subr.mxu0 0.0
    %1494 = vmatpush1.msra.mxu0 0.0
    %1495 = vmatprep.subr.mxu0 0.0
    %1496 = vmatpush1.msra.mxu0 0.0
    %1497 = vmatprep.subr.mxu0 0.0
    %1498 = vmatpush1.msra.mxu0 0.0
    %1499 = vmatprep.subr.mxu0 0.0
    %1500 = vmatpush1.msra.mxu0 0.0
    %1501 = vmatprep.subr.mxu0 0.0
    %1502 = vmatpush1.msra.mxu0 0.0
    %1503 = vmatprep.subr.mxu0 0.0
    %1504 = vmatpush1.msra.mxu0 0.0
    %1505 = vmatprep.subr.mxu0 0.0
    %1506 = vmatpush1.msra.mxu0 0.0
    %1507 = vmatprep.subr.mxu0 0.0
    %1508 = vmatpush1.msra.mxu0 0.0
    %1509 = vmatprep.subr.mxu0 0.0
    %1510 = vmatpush1.msra.mxu0 0.0
    %1511 = vmatprep.subr.mxu0 0.0
    %1512 = vmatpush1.msra.mxu0 0.0
    %1513 = vmatprep.subr.mxu0 0.0
    %1514 = vmatpush1.msra.mxu0 0.0
    %1515 = vmatprep.subr.mxu0 0.0
    %1516 = vmatpush1.msra.mxu0 0.0
    %1517 = vmatprep.subr.mxu0 0.0
    %1518 = vmatpush1.msra.mxu0 0.0
    %1519 = vmatprep.subr.mxu0 0.0
    %1520 = vmatpush1.msra.mxu0 0.0
    %1521 = vmatprep.mubr.f32.mxu0 0.0
    %1522 = vmatmul.mubr.f32.gmra.mrb[0].mxu0 %v1448
    %v1523 = vpop.f32.mrb[0].mxu0
    %v1524 = vadd.f32 0.0, %v1523
    %v1525 = vpop.f32.mrb[0].mxu0
    %1526 = vmatprep.mubr.f32.mxu0 0.0
    %1527 = vmatmul.mubr.f32.gmra.mrb[0].mxu0 %v1451
    %v1528 = vpop.f32.mrb[0].mxu0
    %v1529 = vadd.f32 0.0, %v1528
    %v1530 = vpop.f32.mrb[0].mxu0
    %1531 = vdwg.mxu0
    %vm1532 = vcmask 105472
    %v1533 = vsel %vm1532, %v1524, 0.0
    %1534 = vadd.xlane.f32.xlu0 %v1533
    %v1535 = vpop.xlane.xlu0 %1534
    %v1536 = vsel %vm1532, %v1529, 0.0
    %1537 = vadd.xlane.f32.xlu0 %v1536
    %v1538 = vpop.xlane.xlu0 %1537
    %v1539 = vrcp.pop 13.0
    %v1540 = vmul.f32 %v1535, %v1539
    %v1541 = vmul.f32 %v1538, %v1539
    %v1542 = vsub.f32 %v1524, %v1540
    %v1543 = vsub.f32 %v1529, %v1541
    %v1544 = vmul.f32 %v1542, %v1542
    %v1545 = vmul.f32 %v1543, %v1543
    %v1546 = vsel %vm1532, %v1544, 0.0
    %1547 = vadd.xlane.f32.xlu0 %v1546
    %v1548 = vpop.xlane.xlu0 %1547
    %v1549 = vsel %vm1532, %v1545, 0.0
    %1550 = vadd.xlane.f32.xlu0 %v1549
    %v1551 = vpop.xlane.xlu0 %1550
    %v1552 = vmul.f32 %v1548, 0.083333336
    %v1553 = vmul.f32 %v1551, 0.083333336
    %v1554 = vrsqrt.pop %v1552
    %v1555 = vmul.f32 %v1552, %v1554
    %vm1556 = vcmp.eq.f32.partialorder %v1552, inf
    %v1557 = vsel %vm1556, %v1552, %v1555
    %vm1558 = vcmp.eq.f32.partialorder %v1552, 0.0
    %v1559 = vand.u32 %v1552, 2147483648
    %v1560 = vsel %vm1558, %v1559, %v1557
    %v1561 = vrsqrt.pop %v1553
    %v1562 = vmul.f32 %v1553, %v1561
    %vm1563 = vcmp.eq.f32.partialorder %v1553, inf
    %v1564 = vsel %vm1563, %v1553, %v1562
    %vm1565 = vcmp.eq.f32.partialorder %v1553, 0.0
    %v1566 = vand.u32 %v1553, 2147483648
    %v1567 = vsel %vm1565, %v1566, %v1564
    %v1568 = vadd.f32 %v1560, 1e-06
    %v1569 = vadd.f32 %v1567, 1e-06
    %v1570 = vrcp.pop %v1568
    %v1571 = vrcp.pop %v1569
    %v1572 = vmul.f32 %v1542, %v1570
    %v1573 = vmul.f32 %v1543, %v1571
    %v1574 = vmul.f32 %v1282, %v1572
    %v1575 = vmul.f32 %v1283, %v1573
    %v1576 = vadd.f32 %v1574, %v1284
    %v1577 = vadd.f32 %v1575, %v1285
    %v1578 = vmul.f32 %v1576, 0.2
    %v1579 = vmul.f32 %v1577, 0.2
    %v1580 = vmax.f32 %v1576, %v1578
    %v1581 = vmax.f32 %v1577, %v1579
    %1582 = vrot.lane.b32.xlu0 %v1444, 102
    %v1583 = vpop.permute.xlu0 %1582
    %1584 = vrot.lane.b32.xlu0 %v1445, 102
    %v1585 = vpop.permute.xlu0 %1584
    %v1586 = vsel %vm1446, %v1583, 0
    %v1588 = vsel %vm1446, %v1585, 0
    %1590 = vmatprep.subr.mxu0 0.0
    %1591 = vmatpush1.msra.mxu0 %v1286
    %1592 = vmatprep.subr.mxu0 0.0
    %1593 = vmatpush1.msra.mxu0 %v1287
    %1594 = vmatprep.subr.mxu0 0.0
    %1595 = vmatpush1.msra.mxu0 %v1288
    %1596 = vmatprep.subr.mxu0 0.0
    %1597 = vmatpush1.msra.mxu0 %v1455
    %1598 = vmatprep.subr.mxu0 0.0
    %1599 = vmatpush1.msra.mxu0 0.0
    %1600 = vmatprep.subr.mxu0 0.0
    %1601 = vmatpush1.msra.mxu0 0.0
    %1602 = vmatprep.subr.mxu0 0.0
    %1603 = vmatpush1.msra.mxu0 0.0
    %1604 = vmatprep.subr.mxu0 0.0
    %1605 = vmatpush1.msra.mxu0 0.0
    %1606 = vmatprep.subr.mxu0 0.0
    %1607 = vmatpush1.msra.mxu0 0.0
    %1608 = vmatprep.subr.mxu0 0.0
    %1609 = vmatpush1.msra.mxu0 0.0
    %1610 = vmatprep.subr.mxu0 0.0
    %1611 = vmatpush1.msra.mxu0 0.0
    %1612 = vmatprep.subr.mxu0 0.0
    %1613 = vmatpush1.msra.mxu0 0.0
    %1614 = vmatprep.subr.mxu0 0.0
    %1615 = vmatpush1.msra.mxu0 0.0
    %1616 = vmatprep.subr.mxu0 0.0
    %1617 = vmatpush1.msra.mxu0 0.0
    %1618 = vmatprep.subr.mxu0 0.0
    %1619 = vmatpush1.msra.mxu0 0.0
    %1620 = vmatprep.subr.mxu0 0.0
    %1621 = vmatpush1.msra.mxu0 0.0
    %1622 = vmatprep.subr.mxu0 0.0
    %1623 = vmatpush1.msra.mxu0 0.0
    %1624 = vmatprep.subr.mxu0 0.0
    %1625 = vmatpush1.msra.mxu0 0.0
    %1626 = vmatprep.subr.mxu0 0.0
    %1627 = vmatpush1.msra.mxu0 0.0
    %1628 = vmatprep.subr.mxu0 0.0
    %1629 = vmatpush1.msra.mxu0 0.0
    %1630 = vmatprep.subr.mxu0 0.0
    %1631 = vmatpush1.msra.mxu0 0.0
    %1632 = vmatprep.subr.mxu0 0.0
    %1633 = vmatpush1.msra.mxu0 0.0
    %1634 = vmatprep.subr.mxu0 0.0
    %1635 = vmatpush1.msra.mxu0 0.0
    %1636 = vmatprep.subr.mxu0 0.0
    %1637 = vmatpush1.msra.mxu0 0.0
    %1638 = vmatprep.subr.mxu0 0.0
    %1639 = vmatpush1.msra.mxu0 0.0
    %1640 = vmatprep.subr.mxu0 0.0
    %1641 = vmatpush1.msra.mxu0 0.0
    %1642 = vmatprep.subr.mxu0 0.0
    %1643 = vmatpush1.msra.mxu0 0.0
    %1644 = vmatprep.subr.mxu0 0.0
    %1645 = vmatpush1.msra.mxu0 0.0
    %1646 = vmatprep.subr.mxu0 0.0
    %1647 = vmatpush1.msra.mxu0 0.0
    %1648 = vmatprep.subr.mxu0 0.0
    %1649 = vmatpush1.msra.mxu0 0.0
    %1650 = vmatprep.subr.mxu0 0.0
    %1651 = vmatpush1.msra.mxu0 0.0
    %1652 = vmatprep.subr.mxu0 0.0
    %1653 = vmatpush1.msra.mxu0 0.0
    %1654 = vmatprep.mubr.f32.mxu0 0.0
    %1655 = vmatmul.mubr.f32.gmra.mrb[0].mxu0 %v1586
    %v1656 = vpop.f32.mrb[0].mxu0
    %v1657 = vadd.f32 0.0, %v1656
    %v1658 = vpop.f32.mrb[0].mxu0
    %1659 = vmatprep.mubr.f32.mxu0 0.0
    %1660 = vmatmul.mubr.f32.gmra.mrb[0].mxu0 %v1588
    %v1661 = vpop.f32.mrb[0].mxu0
    %v1662 = vadd.f32 0.0, %v1661
    %v1663 = vpop.f32.mrb[0].mxu0
    %1664 = vdwg.mxu0
    %v1665 = vsel %vm1532, %v1657, 0.0
    %1666 = vadd.xlane.f32.xlu0 %v1665
    %v1667 = vpop.xlane.xlu0 %1666
    %v1668 = vsel %vm1532, %v1662, 0.0
    %1669 = vadd.xlane.f32.xlu0 %v1668
    %v1670 = vpop.xlane.xlu0 %1669
    %v1671 = vmul.f32 %v1667, %v1539
    %v1672 = vmul.f32 %v1670, %v1539
    %v1673 = vsub.f32 %v1657, %v1671
    %v1674 = vsub.f32 %v1662, %v1672
    %v1675 = vmul.f32 %v1673, %v1673
    %v1676 = vmul.f32 %v1674, %v1674
    %v1677 = vsel %vm1532, %v1675, 0.0
    %1678 = vadd.xlane.f32.xlu0 %v1677
    %v1679 = vpop.xlane.xlu0 %1678
    %v1680 = vsel %vm1532, %v1676, 0.0
    %1681 = vadd.xlane.f32.xlu0 %v1680
    %v1682 = vpop.xlane.xlu0 %1681
    %v1683 = vmul.f32 %v1679, 0.083333336
    %v1684 = vmul.f32 %v1682, 0.083333336
    %v1685 = vrsqrt.pop %v1683
    %v1686 = vmul.f32 %v1683, %v1685
    %vm1687 = vcmp.eq.f32.partialorder %v1683, inf
    %v1688 = vsel %vm1687, %v1683, %v1686
    %vm1689 = vcmp.eq.f32.partialorder %v1683, 0.0
    %v1690 = vand.u32 %v1683, 2147483648
    %v1691 = vsel %vm1689, %v1690, %v1688
    %v1692 = vrsqrt.pop %v1684
    %v1693 = vmul.f32 %v1684, %v1692
    %vm1694 = vcmp.eq.f32.partialorder %v1684, inf
    %v1695 = vsel %vm1694, %v1684, %v1693
    %vm1696 = vcmp.eq.f32.partialorder %v1684, 0.0
    %v1697 = vand.u32 %v1684, 2147483648
    %v1698 = vsel %vm1696, %v1697, %v1695
    %v1699 = vadd.f32 %v1691, 1e-06
    %v1700 = vadd.f32 %v1698, 1e-06
    %v1701 = vrcp.pop %v1699
    %v1702 = vrcp.pop %v1700
    %v1703 = vmul.f32 %v1673, %v1701
    %v1704 = vmul.f32 %v1674, %v1702
    %v1705 = vmul.f32 %v1282, %v1703
    %v1706 = vmul.f32 %v1283, %v1704
    %v1707 = vadd.f32 %v1705, %v1284
    %v1708 = vadd.f32 %v1706, %v1285
    %v1709 = vmul.f32 %v1707, 0.2
    %v1710 = vmul.f32 %v1708, 0.2
    %v1711 = vmax.f32 %v1707, %v1709
    %v1712 = vmax.f32 %v1708, %v1710
    %1713 = vst.msk [vmem:[#allocation3] sm:$0xff] %vm1532, %v1580
    %1714 = vst.msk [vmem:[#allocation3 + $0x8] sm:$0xff] %vm1532, %v1581
    %1717 = vrot.lane.b32.xlu0 %v1711, 13
    %v1718 = vpop.permute.xlu0 %1717
    %1719 = vrot.lane.b32.xlu0 %v1712, 13
    %v1720 = vpop.permute.xlu0 %1719
    %vm1723 = vcmask 212072
    %1724 = vst.msk [vmem:[#allocation3] sm:$0xff] %vm1723, %v1718
    %1725 = vst.msk [vmem:[#allocation3 + $0x8] sm:$0xff] %vm1723, %v1720
    // Predicated region
    $region10: #{tpu_custom_call.1} parent=1 // pred_check
      _
    $region11: #{tpu_custom_call.1} parent=1 // pred_check_branch
      %1727 = sbr.rel (0) target = $region13
    $region12: #{tpu_custom_call.1} parent=1 // pred_region
      %s1729 = ssub.s32 256, 256
      %1730 = vsyncadd [#allocation4], %s1729
      %s1731 = sshll.u32 [#allocation3], 4
      %s1732 = int_to_ptr.vmem [resolvable:$true] %s1731
      %1737 = dma.vmem_to_hbm [thread:$0]  %s1732, 256, %s2, [#allocation4], 128, 128, 8
    $region13: #{tpu_custom_call.1} parent=1 // pred_fallthru
      _
    // Predicated region
    $region14: #{tpu_custom_call.1} parent=1 // pred_check
      _
    $region15: #{tpu_custom_call.1} parent=1 // pred_check_branch
      %1739 = sbr.rel (0) target = $region17
    $region16: #{tpu_custom_call.1} parent=1 // pred_region
      %1740 = dma.done [#allocation4], 256
    $region17: #{tpu_custom_call.1} parent=1 // pred_fallthru
      _
    %1741 = vsyncpa [#allocation4], 1

</llo_original>
